<compile_context>
chip_gen: v5e
topology: v5e:2x2
jax: 0.10.0
libtpu: 0.0.40
codegen_flags: <defaults>
</compile_context>

<pallas_src>
import jax
import jax.numpy as jnp
from jax.experimental import pallas as pl
from jax.experimental.pallas import tpu as pltpu

INPUT_DIMS = [6, 74, 124, 9623, 2, 9, 2, 2610]   # first 8 vocab sizes from source
CONDENSE   = [16] * 8                            # synthetic condense_dim (sum = 128)

NINP     = sum(CONDENSE)     # 128, lane-aligned
NHID     = 128               # lane-aligned hidden width (source default 2048)
NLAYERS  = 5
NOUT     = 1
NOUT_PAD = NHID              # last layer padded to a lane-dense 128-wide slab
LEAK     = 0.15
BN_EPS   = 1e-5

NSTAGES  = NLAYERS + 1       # stage 0 = input-stats sweep, stages 1..5 = layers
TB       = 512               # batch-tile rows (multiple of 8; amortizes step cost)

# uniform lane width lets one activation scratch / one weight stack serve all stages
assert NINP == NHID == NOUT_PAD


# ------------------------------- kernel -------------------------------------
def mlp_kernel(x_ref, w_ref, vec_ref, out_ref,
               act_ref, asum_ref, asq_ref, scale_ref, shift_ref):
    s = pl.program_id(0)                  # layer stage (0 .. NSTAGES-1)
    t = pl.program_id(1)                  # batch tile
    tb = x_ref.shape[0]
    batch = pl.num_programs(1) * tb       # full batch size
    off = pl.multiple_of(t * tb, tb)

    # ---- stage boundary: finalize stats of stage s-1 and FOLD the BN affine --
    @pl.when(jnp.logical_and(t == 0, s > 0))
    def _():
        inv_b = 1.0 / batch
        mean = asum_ref[...] * inv_b
        var = asq_ref[...] * inv_b - mean * mean   # biased, training-mode BN
        rstd = jax.lax.rsqrt(var + BN_EPS)
        gamma = vec_ref[pl.ds(s - 1, 1), :]
        beta = vec_ref[pl.ds(NLAYERS + s - 1, 1), :]
        scale = rstd * gamma
        scale_ref[...] = scale
        shift_ref[...] = beta - mean * scale       # n = u*scale + shift

    @pl.when(t == 0)
    def _():
        asum_ref[...] = jnp.zeros_like(asum_ref)
        asq_ref[...] = jnp.zeros_like(asq_ref)

    # ---- stage 0: stash input + accumulate BatchNorm1d(ninp) statistics ----
    @pl.when(s == 0)
    def _():
        xx = x_ref[...].astype(jnp.float32)
        act_ref[pl.ds(off, tb), :] = xx
        asum_ref[...] += jnp.sum(xx, axis=0, keepdims=True)
        asq_ref[...] += jnp.sum(xx * xx, axis=0, keepdims=True)

    # ---- stages 1..NLAYERS: folded BN (prev-stage stats) -> Linear[s-1] -----
    @pl.when(s > 0)
    def _():
        u = act_ref[pl.ds(off, tb), :]
        bias = vec_ref[pl.ds(2 * NLAYERS + s - 1, 1), :]

        n = u * scale_ref[...] + shift_ref[...]
        h = jnp.dot(n.astype(jnp.bfloat16), w_ref[s - 1],
                    preferred_element_type=jnp.float32) + bias

        # non-final stages: LeakyReLU + statistics feeding the next stage's BN
        @pl.when(s < NSTAGES - 1)
        def _():
            hh = jnp.where(h >= 0, h, LEAK * h)
            act_ref[pl.ds(off, tb), :] = hh
            # TODO(synk): if VALU is still the binding slot, these column sums
            # can be offloaded to the (mostly idle) MXU via a ones-row matmul.
            asum_ref[...] += jnp.sum(hh, axis=0, keepdims=True)
            asq_ref[...] += jnp.sum(hh * hh, axis=0, keepdims=True)

        # final stage only: column 0 of h (pre-LeakyReLU) is the real nout=1
        # output; transpose once (XLU has slack) and store a lane-dense row.
        @pl.when(s == NSTAGES - 1)
        def _():
            out_ref[0] = jnp.transpose(h)[0:1, :]


# ------------------------------ wrapper -------------------------------------
def mlp_forward(x, w_stack, vec_stack, *, tb=TB):
    """x: [B, NINP] float32 -> [B] float32  (matches torch output.squeeze(1))."""
    B = x.shape[0]
    # TODO(synk): a ragged final batch tile would need masked statistics.
    assert B % tb == 0, "batch must be a multiple of the batch tile"
    n_tiles = B // tb

    # TODO(synk): activations exceeding VMEM (e.g. v7x 64 MiB at B ~> 100K rows)
    # would need a bf16 act scratch (stats computed on the rounded values) or
    # an HBM round-trip between stages.
    vmem_limit = min(max(
        B * NHID * 4                           # full-batch activation scratch
        + 2 * tb * NINP * 4                    # x tile double buffer
        + 2 * NLAYERS * NHID * NOUT_PAD * 2    # resident bf16 weight stack
        + 2 * 3 * NLAYERS * NHID * 4           # packed gammas/betas/biases
        + 2 * 8 * tb * 4                       # narrow output tile buffers
        + 4 * NHID * 4                         # stat scratches
        + (4 << 20),                           # headroom
        16 << 20), 128 << 20)

    out = pl.pallas_call(
        mlp_kernel,
        out_shape=jax.ShapeDtypeStruct((n_tiles, 1, tb), jnp.float32),
        grid_spec=pltpu.PrefetchScalarGridSpec(
            num_scalar_prefetch=0,
            grid=(NSTAGES, n_tiles),
            in_specs=[
                # x is only read at stage 0; pin its block while s > 0 so each
                # batch tile is DMA'd from HBM exactly once (was 6x traffic).
                pl.BlockSpec((tb, NINP),
                             lambda s, t: (jnp.where(s == 0, t, n_tiles - 1), 0)),
                # whole bf16 weight stack VMEM-resident (160 KB), fetched once
                pl.BlockSpec((NLAYERS, NHID, NOUT_PAD), lambda s, t: (0, 0, 0)),
                # packed small params (gammas | betas | biases): one resident tile
                pl.BlockSpec((3 * NLAYERS, NHID), lambda s, t: (0, 0)),
            ],
            # lane-dense narrow output: block index only advances during the
            # final stage, so HBM sees exactly n_tiles * tb * 4 bytes of writes.
            out_specs=pl.BlockSpec(
                (1, 1, tb),
                lambda s, t: (jnp.where(s == NSTAGES - 1, t, 0), 0, 0)),
            scratch_shapes=[
                pltpu.VMEM((B, NHID), jnp.float32),   # inter-stage activations
                pltpu.VMEM((1, NHID), jnp.float32),   # running sum
                pltpu.VMEM((1, NHID), jnp.float32),   # running sum of squares
                pltpu.VMEM((1, NHID), jnp.float32),   # folded BN scale
                pltpu.VMEM((1, NHID), jnp.float32),   # folded BN shift
            ],
        ),
        compiler_params=pltpu.CompilerParams(
            # batch tiles share the BN statistics accumulators (a cross-tile
            # reduction), so both grid axes must remain sequential.
            # TODO(synk): v7x megacore needs per-core partial stats + combine.
            dimension_semantics=("arbitrary", "arbitrary"),
            vmem_limit_bytes=vmem_limit),
    )(x, w_stack, vec_stack)
    return out.reshape(B)   # (n_tiles, 1, tb) -> (B,) ; matches .squeeze(1)


# --------------------------- parameter init ---------------------------------
def init_params(key):
    """torch-matching init: xavier_uniform_ Linear weights, torch-default
    uniform biases, BN gamma=1 / beta=0.  Weights stored [in, out] (transpose
    of nn.Linear.weight), cast to bf16, last layer padded 1 -> 128 columns."""
    in_dims = [NINP] + [NHID] * (NLAYERS - 1)
    out_dims = [NHID] * (NLAYERS - 1) + [NOUT]
    keys = jax.random.split(key, 2 * NLAYERS)

    ws, bs = [], []
    for layer in range(NLAYERS):
        fi, fo = in_dims[layer], out_dims[layer]
        limit = (6.0 / (fi + fo)) ** 0.5                      # xavier_uniform_
        w = jax.random.uniform(keys[2 * layer], (fi, fo), jnp.float32,
                               -limit, limit)
        bbound = 1.0 / (fi ** 0.5)                            # torch Linear bias default
        b = jax.random.uniform(keys[2 * layer + 1], (fo,), jnp.float32,
                               -bbound, bbound)
        ws.append(jnp.pad(w, ((0, 0), (0, NOUT_PAD - fo))))   # zero-pad extra cols
        bs.append(jnp.pad(b, (0, NOUT_PAD - fo)))

    w_stack = jnp.stack(ws, axis=0).astype(jnp.bfloat16)      # [5, 128, 128] bf16
    gammas = jnp.ones((NLAYERS, NHID), jnp.float32)           # BN_in, BN_h0..h3
    betas = jnp.zeros((NLAYERS, NHID), jnp.float32)
    vec_stack = jnp.concatenate([gammas, betas, jnp.stack(bs, axis=0)], axis=0)
    return w_stack, vec_stack                                 # [5,128,128], [15,128]


def init_embeddings(key):
    tables = []
    for i, (vocab, dim) in enumerate(zip(INPUT_DIMS, CONDENSE)):
        k = jax.random.fold_in(key, i)
        tables.append(jax.random.normal(k, (vocab, dim), jnp.float32))
    return tables


def embed(input_list, tables):
    # TODO(synk): the per-feature nn.Embedding gather stays in plain JAX;
    # fusing it would need a scalar-prefetch / per-row manual-DMA gather which
    # is not worth it at these sizes.
    pieces = [jnp.take(t, idx, axis=0) for t, idx in zip(tables, input_list)]
    return jnp.concatenate(pieces, axis=-1)


# ------------------------- pure-JAX reference --------------------------------
def mlp_reference(x, w_stack, vec_stack):
    """Reference forward matching the PyTorch module (training-mode BN)."""
    w = w_stack.astype(jnp.float32)
    gammas = vec_stack[:NLAYERS]
    betas = vec_stack[NLAYERS:2 * NLAYERS]
    biases = vec_stack[2 * NLAYERS:]
    h = x
    for layer in range(NLAYERS):
        m = jnp.mean(h, axis=0, keepdims=True)
        v = jnp.mean(jnp.square(h - m), axis=0, keepdims=True)
        h = (h - m) * jax.lax.rsqrt(v + BN_EPS) * gammas[layer] + betas[layer]
        h = h @ w[layer] + biases[layer]
        if layer != NLAYERS - 1:
            h = jnp.where(h >= 0, h, LEAK * h)
    return h[:, 0]


# --------------------------------- main --------------------------------------
if __name__ == "__main__":
    key = jax.random.PRNGKey(0)
    k_emb, k_mlp, k_in = jax.random.split(key, 3)

    tables = init_embeddings(k_emb)
    w_stack, vec_stack = init_params(k_mlp)

    B = 2 * TB   # 1024: two batch tiles so the grid actually sweeps the batch
    input_list = [
        jax.random.randint(jax.random.fold_in(k_in, i), (B,), 0, vocab)
        for i, vocab in enumerate(INPUT_DIMS)
    ]

    x = embed(input_list, tables)                                   # [B, 128] f32
    out = jax.block_until_ready(mlp_forward(x, w_stack, vec_stack)) # [B]

    assert out.shape == (B,) and out.dtype == jnp.float32
    ref = mlp_reference(x, w_stack, vec_stack)
    max_err = float(jnp.max(jnp.abs(out - ref)))
    assert max_err < 0.1, f"kernel/reference mismatch: {max_err}"
    print("KERNEL_OK")
</pallas_src>

<mosaic_0001>
module attributes {stable_mosaic.version = 11 : i64} {
  func.func @mlp_kernel(%arg0: i32, %arg1: i32, %arg2: memref<512x128xf32, #tpu.memory_space<vmem>>, %arg3: memref<5x128x128xbf16, #tpu.memory_space<vmem>>, %arg4: memref<15x128xf32, #tpu.memory_space<vmem>>, %arg5: memref<1x1x512xf32, #tpu.memory_space<vmem>>, %arg6: memref<1024x128xf32, #tpu.memory_space<vmem>>, %arg7: memref<1x128xf32, #tpu.memory_space<vmem>>, %arg8: memref<1x128xf32, #tpu.memory_space<vmem>>, %arg9: memref<1x128xf32, #tpu.memory_space<vmem>>, %arg10: memref<1x128xf32, #tpu.memory_space<vmem>>) attributes {dimension_semantics = [#tpu.dimension_semantics<arbitrary>, #tpu.dimension_semantics<arbitrary>], iteration_bounds = array<i64: 6, 2>, scalar_prefetch = 0 : i64, scratch_operands = 5 : i64, tpu.core_type = #tpu.core_type<tc>, window_params = [{transform_indices = @transform_0, window_bounds = array<i64: 512, 128>}, {pipeline_mode = #tpu.pipeline_mode<synchronous>, transform_indices = @transform_1, window_bounds = array<i64: 5, 128, 128>}, {pipeline_mode = #tpu.pipeline_mode<synchronous>, transform_indices = @transform_2, window_bounds = array<i64: 15, 128>}, {transform_indices = @transform_3, window_bounds = array<i64: 1, 1, 512>}]} {
    %c512_i32 = arith.constant 512 : i32
    %0 = arith.muli %arg1, %c512_i32 : i32
    %1 = tpu.assume_multiple %0, 512 : i32
    %c0_i32 = arith.constant 0 : i32
    %2 = arith.cmpi eq, %arg1, %c0_i32 : i32
    %c0_i32_0 = arith.constant 0 : i32
    %3 = arith.cmpi sgt, %arg0, %c0_i32_0 : i32
    %4 = arith.andi %2, %3 : i1
    %5 = arith.extui %4 : i1 to i32
    %c0_i32_1 = arith.constant 0 : i32
    %6 = arith.cmpi ne, %5, %c0_i32_1 : i32
    scf.if %6 {
      %c0 = arith.constant 0 : index
      %c0_8 = arith.constant 0 : index
      %16 = vector.load %arg7[%c0, %c0_8] : memref<1x128xf32, #tpu.memory_space<vmem>>, vector<1x128xf32>
      %cst = arith.constant 9.765625E-4 : f32
      %17 = vector.broadcast %cst : f32 to vector<1x128xf32>
      %18 = arith.mulf %16, %17 : vector<1x128xf32>
      %c0_9 = arith.constant 0 : index
      %c0_10 = arith.constant 0 : index
      %19 = vector.load %arg8[%c0_9, %c0_10] : memref<1x128xf32, #tpu.memory_space<vmem>>, vector<1x128xf32>
      %cst_11 = arith.constant 9.765625E-4 : f32
      %20 = vector.broadcast %cst_11 : f32 to vector<1x128xf32>
      %21 = arith.mulf %19, %20 : vector<1x128xf32>
      %22 = arith.mulf %18, %18 : vector<1x128xf32>
      %23 = arith.subf %21, %22 : vector<1x128xf32>
      %cst_12 = arith.constant 9.99999974E-6 : f32
      %24 = vector.broadcast %cst_12 : f32 to vector<1x128xf32>
      %25 = arith.addf %23, %24 : vector<1x128xf32>
      %26 = math.rsqrt %25 : vector<1x128xf32>
      %c1_i32 = arith.constant 1 : i32
      %27 = arith.subi %arg0, %c1_i32 : i32
      %28 = arith.index_cast %27 : i32 to index
      %c0_13 = arith.constant 0 : index
      %29 = vector.load %arg4[%28, %c0_13] : memref<15x128xf32, #tpu.memory_space<vmem>>, vector<1x128xf32>
      %c5_i32 = arith.constant 5 : i32
      %30 = arith.addi %c5_i32, %arg0 : i32
      %c1_i32_14 = arith.constant 1 : i32
      %31 = arith.subi %30, %c1_i32_14 : i32
      %32 = arith.index_cast %31 : i32 to index
      %c0_15 = arith.constant 0 : index
      %33 = vector.load %arg4[%32, %c0_15] : memref<15x128xf32, #tpu.memory_space<vmem>>, vector<1x128xf32>
      %34 = arith.mulf %26, %29 : vector<1x128xf32>
      %c0_16 = arith.constant 0 : index
      %c0_17 = arith.constant 0 : index
      %35 = vector.load %arg9[%c0_16, %c0_17] : memref<1x128xf32, #tpu.memory_space<vmem>>, vector<1x128xf32>
      tpu.vector_store %arg9[%c0_16, %c0_17], %34 {strides = array<i32>} : memref<1x128xf32, #tpu.memory_space<vmem>>, vector<1x128xf32>,
      %36 = arith.mulf %18, %34 : vector<1x128xf32>
      %37 = arith.subf %33, %36 : vector<1x128xf32>
      %c0_18 = arith.constant 0 : index
      %c0_19 = arith.constant 0 : index
      %38 = vector.load %arg10[%c0_18, %c0_19] : memref<1x128xf32, #tpu.memory_space<vmem>>, vector<1x128xf32>
      tpu.vector_store %arg10[%c0_18, %c0_19], %37 {strides = array<i32>} : memref<1x128xf32, #tpu.memory_space<vmem>>, vector<1x128xf32>,
    } else {
    }
    %c0_i32_2 = arith.constant 0 : i32
    %7 = arith.cmpi eq, %arg1, %c0_i32_2 : i32
    %8 = arith.extui %7 : i1 to i32
    %c0_i32_3 = arith.constant 0 : i32
    %9 = arith.cmpi ne, %8, %c0_i32_3 : i32
    scf.if %9 {
      %cst = arith.constant 0.000000e+00 : f32
      %16 = vector.broadcast %cst : f32 to vector<1x128xf32>
      %c0 = arith.constant 0 : index
      %c0_8 = arith.constant 0 : index
      %17 = vector.load %arg7[%c0, %c0_8] : memref<1x128xf32, #tpu.memory_space<vmem>>, vector<1x128xf32>
      tpu.vector_store %arg7[%c0, %c0_8], %16 {strides = array<i32>} : memref<1x128xf32, #tpu.memory_space<vmem>>, vector<1x128xf32>,
      %cst_9 = arith.constant 0.000000e+00 : f32
      %18 = vector.broadcast %cst_9 : f32 to vector<1x128xf32>
      %c0_10 = arith.constant 0 : index
      %c0_11 = arith.constant 0 : index
      %19 = vector.load %arg8[%c0_10, %c0_11] : memref<1x128xf32, #tpu.memory_space<vmem>>, vector<1x128xf32>
      tpu.vector_store %arg8[%c0_10, %c0_11], %18 {strides = array<i32>} : memref<1x128xf32, #tpu.memory_space<vmem>>, vector<1x128xf32>,
    } else {
    }
    %c0_i32_4 = arith.constant 0 : i32
    %10 = arith.cmpi eq, %arg0, %c0_i32_4 : i32
    %11 = arith.extui %10 : i1 to i32
    %c0_i32_5 = arith.constant 0 : i32
    %12 = arith.cmpi ne, %11, %c0_i32_5 : i32
    scf.if %12 {
      %c0 = arith.constant 0 : index
      %c0_8 = arith.constant 0 : index
      %16 = vector.load %arg2[%c0, %c0_8] : memref<512x128xf32, #tpu.memory_space<vmem>>, vector<512x128xf32>
      %17 = arith.index_cast %1 : i32 to index
      %c0_9 = arith.constant 0 : index
      %18 = vector.load %arg6[%17, %c0_9] : memref<1024x128xf32, #tpu.memory_space<vmem>>, vector<512x128xf32>
      tpu.vector_store %arg6[%17, %c0_9], %16 {strides = array<i32>} : memref<1024x128xf32, #tpu.memory_space<vmem>>, vector<512x128xf32>,
      %c0_10 = arith.constant 0 : index
      %c0_11 = arith.constant 0 : index
      %19 = vector.load %arg7[%c0_10, %c0_11] : memref<1x128xf32, #tpu.memory_space<vmem>>, vector<1x128xf32>
      %cst = arith.constant dense<0.000000e+00> : vector<128xf32>
      %20 = vector.multi_reduction <add>, %16, %cst [0] : vector<512x128xf32> to vector<128xf32>
      %21 = vector.shape_cast %20 : vector<128xf32> to vector<1x128xf32>
      %22 = arith.addf %19, %21 : vector<1x128xf32>
      %c0_12 = arith.constant 0 : index
      %c0_13 = arith.constant 0 : index
      %23 = vector.load %arg7[%c0_12, %c0_13] : memref<1x128xf32, #tpu.memory_space<vmem>>, vector<1x128xf32>
      tpu.vector_store %arg7[%c0_12, %c0_13], %22 {strides = array<i32>} : memref<1x128xf32, #tpu.memory_space<vmem>>, vector<1x128xf32>,
      %c0_14 = arith.constant 0 : index
      %c0_15 = arith.constant 0 : index
      %24 = vector.load %arg8[%c0_14, %c0_15] : memref<1x128xf32, #tpu.memory_space<vmem>>, vector<1x128xf32>
      %25 = arith.mulf %16, %16 : vector<512x128xf32>
      %cst_16 = arith.constant dense<0.000000e+00> : vector<128xf32>
      %26 = vector.multi_reduction <add>, %25, %cst_16 [0] : vector<512x128xf32> to vector<128xf32>
      %27 = vector.shape_cast %26 : vector<128xf32> to vector<1x128xf32>
      %28 = arith.addf %24, %27 : vector<1x128xf32>
      %c0_17 = arith.constant 0 : index
      %c0_18 = arith.constant 0 : index
      %29 = vector.load %arg8[%c0_17, %c0_18] : memref<1x128xf32, #tpu.memory_space<vmem>>, vector<1x128xf32>
      tpu.vector_store %arg8[%c0_17, %c0_18], %28 {strides = array<i32>} : memref<1x128xf32, #tpu.memory_space<vmem>>, vector<1x128xf32>,
    } else {
    }
    %c0_i32_6 = arith.constant 0 : i32
    %13 = arith.cmpi sgt, %arg0, %c0_i32_6 : i32
    %14 = arith.extui %13 : i1 to i32
    %c0_i32_7 = arith.constant 0 : i32
    %15 = arith.cmpi ne, %14, %c0_i32_7 : i32
    scf.if %15 {
      %16 = arith.index_cast %1 : i32 to index
      %c0 = arith.constant 0 : index
      %17 = vector.load %arg6[%16, %c0] : memref<1024x128xf32, #tpu.memory_space<vmem>>, vector<512x128xf32>
      %c10_i32 = arith.constant 10 : i32
      %18 = arith.addi %c10_i32, %arg0 : i32
      %c1_i32 = arith.constant 1 : i32
      %19 = arith.subi %18, %c1_i32 : i32
      %20 = arith.index_cast %19 : i32 to index
      %c0_8 = arith.constant 0 : index
      %21 = vector.load %arg4[%20, %c0_8] : memref<15x128xf32, #tpu.memory_space<vmem>>, vector<1x128xf32>
      %c0_9 = arith.constant 0 : index
      %c0_10 = arith.constant 0 : index
      %22 = vector.load %arg9[%c0_9, %c0_10] : memref<1x128xf32, #tpu.memory_space<vmem>>, vector<1x128xf32>
      %23 = vector.broadcast %22 : vector<1x128xf32> to vector<512x128xf32>
      %24 = arith.mulf %17, %23 : vector<512x128xf32>
      %c0_11 = arith.constant 0 : index
      %c0_12 = arith.constant 0 : index
      %25 = vector.load %arg10[%c0_11, %c0_12] : memref<1x128xf32, #tpu.memory_space<vmem>>, vector<1x128xf32>
      %26 = vector.broadcast %25 : vector<1x128xf32> to vector<512x128xf32>
      %27 = arith.addf %24, %26 : vector<512x128xf32>
      %28 = arith.truncf %27 : vector<512x128xf32> to vector<512x128xbf16>
      %c1_i32_13 = arith.constant 1 : i32
      %29 = arith.subi %arg0, %c1_i32_13 : i32
      %30 = arith.index_cast %29 : i32 to index
      %c0_14 = arith.constant 0 : index
      %c0_15 = arith.constant 0 : index
      %31 = vector.load %arg3[%30, %c0_14, %c0_15] : memref<5x128x128xbf16, #tpu.memory_space<vmem>>, vector<1x128x128xbf16>
      %32 = vector.shape_cast %31 : vector<1x128x128xbf16> to vector<128x128xbf16>
      %cst = arith.constant dense<0.000000e+00> : vector<512x128xf32>
      %33 = tpu.matmul %28, %32, %cst {dimension_numbers = #tpu.dot_dimension_numbers<[1], [0], [0], [1], [0, 0, 1, 1], [], []>} : vector<512x128xbf16>, vector<128x128xbf16>, vector<512x128xf32> -> vector<512x128xf32>
      %34 = vector.broadcast %21 : vector<1x128xf32> to vector<512x128xf32>
      %35 = arith.addf %33, %34 : vector<512x128xf32>
      %c5_i32 = arith.constant 5 : i32
      %36 = arith.cmpi slt, %arg0, %c5_i32 : i32
      %37 = arith.extui %36 : i1 to i32
      %c0_i32_16 = arith.constant 0 : i32
      %38 = arith.cmpi ne, %37, %c0_i32_16 : i32
      scf.if %38 {
        %cst_19 = arith.constant 0.000000e+00 : f32
        %42 = vector.broadcast %cst_19 : f32 to vector<512x128xf32>
        %43 = arith.cmpf oge, %35, %42 : vector<512x128xf32>
        %cst_20 = arith.constant 1.500000e-01 : f32
        %44 = vector.broadcast %cst_20 : f32 to vector<512x128xf32>
        %45 = arith.mulf %44, %35 : vector<512x128xf32>
        %46 = arith.select %43, %35, %45 : vector<512x128xi1>, vector<512x128xf32>
        %47 = arith.index_cast %1 : i32 to index
        %c0_21 = arith.constant 0 : index
        %48 = vector.load %arg6[%47, %c0_21] : memref<1024x128xf32, #tpu.memory_space<vmem>>, vector<512x128xf32>
        tpu.vector_store %arg6[%47, %c0_21], %46 {strides = array<i32>} : memref<1024x128xf32, #tpu.memory_space<vmem>>, vector<512x128xf32>,
        %c0_22 = arith.constant 0 : index
        %c0_23 = arith.constant 0 : index
        %49 = vector.load %arg7[%c0_22, %c0_23] : memref<1x128xf32, #tpu.memory_space<vmem>>, vector<1x128xf32>
        %cst_24 = arith.constant dense<0.000000e+00> : vector<128xf32>
        %50 = vector.multi_reduction <add>, %46, %cst_24 [0] : vector<512x128xf32> to vector<128xf32>
        %51 = vector.shape_cast %50 : vector<128xf32> to vector<1x128xf32>
        %52 = arith.addf %49, %51 : vector<1x128xf32>
        %c0_25 = arith.constant 0 : index
        %c0_26 = arith.constant 0 : index
        %53 = vector.load %arg7[%c0_25, %c0_26] : memref<1x128xf32, #tpu.memory_space<vmem>>, vector<1x128xf32>
        tpu.vector_store %arg7[%c0_25, %c0_26], %52 {strides = array<i32>} : memref<1x128xf32, #tpu.memory_space<vmem>>, vector<1x128xf32>,
        %c0_27 = arith.constant 0 : index
        %c0_28 = arith.constant 0 : index
        %54 = vector.load %arg8[%c0_27, %c0_28] : memref<1x128xf32, #tpu.memory_space<vmem>>, vector<1x128xf32>
        %55 = arith.mulf %46, %46 : vector<512x128xf32>
        %cst_29 = arith.constant dense<0.000000e+00> : vector<128xf32>
        %56 = vector.multi_reduction <add>, %55, %cst_29 [0] : vector<512x128xf32> to vector<128xf32>
        %57 = vector.shape_cast %56 : vector<128xf32> to vector<1x128xf32>
        %58 = arith.addf %54, %57 : vector<1x128xf32>
        %c0_30 = arith.constant 0 : index
        %c0_31 = arith.constant 0 : index
        %59 = vector.load %arg8[%c0_30, %c0_31] : memref<1x128xf32, #tpu.memory_space<vmem>>, vector<1x128xf32>
        tpu.vector_store %arg8[%c0_30, %c0_31], %58 {strides = array<i32>} : memref<1x128xf32, #tpu.memory_space<vmem>>, vector<1x128xf32>,
      } else {
      }
      %c5_i32_17 = arith.constant 5 : i32
      %39 = arith.cmpi eq, %arg0, %c5_i32_17 : i32
      %40 = arith.extui %39 : i1 to i32
      %c0_i32_18 = arith.constant 0 : i32
      %41 = arith.cmpi ne, %40, %c0_i32_18 : i32
      scf.if %41 {
        %42 = tpu.transpose %35, [1, 0] : vector<512x128xf32> -> vector<128x512xf32>
        %43 = vector.extract_strided_slice %42 {offsets = [0, 0], sizes = [1, 512], strides = [1, 1]} : vector<128x512xf32> to vector<1x512xf32>
        %c0_19 = arith.constant 0 : index
        %c0_20 = arith.constant 0 : index
        %c0_21 = arith.constant 0 : index
        %44 = vector.load %arg5[%c0_19, %c0_20, %c0_21] : memref<1x1x512xf32, #tpu.memory_space<vmem>>, vector<1x1x512xf32>
        %45 = vector.shape_cast %44 : vector<1x1x512xf32> to vector<1x512xf32>
        %46 = vector.shape_cast %43 : vector<1x512xf32> to vector<1x1x512xf32>
        tpu.vector_store %arg5[%c0_19, %c0_20, %c0_21], %46 {strides = array<i32>} : memref<1x1x512xf32, #tpu.memory_space<vmem>>, vector<1x1x512xf32>,
      } else {
      }
    } else {
    }
    return
  }
  func.func @transform_0(%arg0: i32, %arg1: i32) -> (i32, i32) {
    %c0_i32 = arith.constant 0 : i32
    %0 = arith.cmpi eq, %arg0, %c0_i32 : i32
    %c1_i32 = arith.constant 1 : i32
    %1 = arith.select %0, %arg1, %c1_i32 : i32
    %c0_i32_0 = arith.constant 0 : i32
    %c0_i32_1 = arith.constant 0 : i32
    return %1, %c0_i32_0 : i32, i32
  }
  func.func @transform_1(%arg0: i32, %arg1: i32) -> (i32, i32, i32) {
    %c0_i32 = arith.constant 0 : i32
    %c0_i32_0 = arith.constant 0 : i32
    %c0_i32_1 = arith.constant 0 : i32
    %c0_i32_2 = arith.constant 0 : i32
    return %c0_i32, %c0_i32_0, %c0_i32_1 : i32, i32, i32
  }
  func.func @transform_2(%arg0: i32, %arg1: i32) -> (i32, i32) {
    %c0_i32 = arith.constant 0 : i32
    %c0_i32_0 = arith.constant 0 : i32
    %c0_i32_1 = arith.constant 0 : i32
    return %c0_i32, %c0_i32_0 : i32, i32
  }
  func.func @transform_3(%arg0: i32, %arg1: i32) -> (i32, i32, i32) {
    %c5_i32 = arith.constant 5 : i32
    %0 = arith.cmpi eq, %arg0, %c5_i32 : i32
    %c0_i32 = arith.constant 0 : i32
    %1 = arith.select %0, %arg1, %c0_i32 : i32
    %c0_i32_0 = arith.constant 0 : i32
    %c0_i32_1 = arith.constant 0 : i32
    %c0_i32_2 = arith.constant 0 : i32
    return %1, %c0_i32_0, %c0_i32_1 : i32, i32, i32
  }
}

</mosaic_0001>

<llo_original>
// kernel: tpu_custom_call.1
$region0: #{tpu_custom_call.1}
  #allocation0 [shape = 'u32[]', space=smem, size = 0x4, offset = 0x4, fixed_abs, tag = 'smem constant byte address 0x4 - core index']
  #allocation1 [shape = 'u32[72,128]{1,0:T(1,128)}', space=vmem, size = 0x9000, scoped, tag = 'internal scratch']
  #allocation2 [shape = 'f32[1024,128]{1,0:T(8,128)}', space=vmem, size = 0x80000, scoped, tag = 'scratch operand']
  #allocation3 [shape = 'f32[1,128]{1,0:T(1,128)}', space=vmem, size = 0x200, scoped, tag = 'scratch operand']
  #allocation4 [shape = 'f32[1,128]{1,0:T(1,128)}', space=vmem, size = 0x200, scoped, tag = 'scratch operand']
  #allocation5 [shape = 'f32[1,128]{1,0:T(1,128)}', space=vmem, size = 0x200, scoped, tag = 'scratch operand']
  #allocation6 [shape = 'f32[1,128]{1,0:T(1,128)}', space=vmem, size = 0x200, scoped, tag = 'scratch operand']
  %s0 = inlined_call_operand.hbm [shape: f32[1024,128], index: 0, kind: input, shape index: {}]
  %s1 = inlined_call_operand.hbm [shape: bf16[5,128,128], index: 1, kind: input, shape index: {}]
  %s2 = inlined_call_operand.hbm [shape: f32[15,128], index: 2, kind: input, shape index: {}]
  %s3 = inlined_call_operand.hbm [shape: f32[2,1,512], index: 3, kind: output, shape index: {}]
  %s4 = sld [smem:[#allocation0]]
  $region81: #{tpu_custom_call.1} parent=0
    _
  %s6 = ssub.s32 1, %s4
  %s7 = scalar_select 0, %s6, %s4
  $region1: #{tpu_custom_call.1} parent=0
    #allocation7 [shape = 'u8[524288]{0}', space=vmem, size = 0x80000, scoped, tag = 'input window, operand 0']
    #allocation8 [shape = 's32[2]{0}', space=sflag, size = 0x8, scoped, tag = 'scoped memory for tpu_custom_call.1']
    #allocation9 [shape = 's32[2]{0}', space=sflag, size = 0x8, scoped, tag = 'scoped memory for tpu_custom_call.1']
    #allocation10 [shape = 'u8[163840]{0}', space=vmem, size = 0x28000, scoped, tag = 'input window, operand 1, single buffered']
    #allocation11 [shape = 's32[1]{0}', space=sflag, size = 0x4, scoped, tag = 'scoped memory for tpu_custom_call.1']
    #allocation12 [shape = 'u8[8192]{0}', space=vmem, size = 0x2000, scoped, tag = 'input window, operand 2, single buffered']
    #allocation13 [shape = 'u8[4096]{0}', space=vmem, size = 0x1000, scoped, tag = 'output window, operand 0']
    %8 = vsyncpa [#allocation8], 0
    %s9 = scalar_lea.sflag [#allocation8], 1
    %10 = vsyncpa %s9, 0
    %11 = vsyncpa [#allocation11], 0
    %12 = vsyncpa [#allocation9], 0
    %s13 = scalar_lea.sflag [#allocation9], 1
    %14 = vsyncpa %s13, 0
    loop: start=0, step=1, limit=14
    $region2: #{tpu_custom_call.1} parent=1 // loop_pre_header
      _
    $region3: #{tpu_custom_call.1} parent=1 // loop_header
      %s16 = sphi 0, %s20
      %p17 = scmp.ge.s32.totalorder %s16, 14
      %s23 = sphi 0, %s35
      %s24 = sphi 0, %s31
      %s25 = sphi 0, %s23
      %s26 = sphi 0, %s24
      %s27 = sphi 0, %s25
      %s28 = sphi 0, %s26
      %s42 = sphi 0, %s44
      %s45 = sphi 0, %s42
      %s46 = sphi 0, %s45
      %s62 = sphi 0, %s46
      %s66 = sphi 0, %s66
      %s68 = sphi 0, %s66
      %s69 = sphi 0, %s68
      %s83 = sphi 0, %s69
      %s87 = sphi 0, %s87
      %s89 = sphi 0, %s87
      %s90 = sphi 0, %s89
      %s104 = sphi 0, %s90
      %s114 = sphi 0, %s116
      %s117 = sphi 0, %s114
      %s118 = sphi 0, %s117
      %s134 = sphi 0, %s118
    $region4: #{tpu_custom_call.1} parent=1 // loop_header_branch
      %19 = sbr.rel (%p17) target = $region8
    $region5: #{tpu_custom_call.1} parent=1 // loop_body
      %s21 = ssub.s32 %s16, 1
      %s22 = ssub.s32 %s16, 2
      %s29 = sadd.s32 1, %s24
      %p30 = scmp.ge.s32.totalorder %s29, 2
      %s31 = scalar_select %p30, 0, %s29
      %s32 = sadd.s32 1, %s23
      %s33 = scalar_select %p30, %s32, %s23
      %p34 = scmp.ge.s32.totalorder %s33, 6
      %s35 = scalar_select %p34, 0, %s33
      %p36 = scmp.eq.s32.totalorder %s23, 0
      %s37 = scalar_select %p36, %s24, 1
      %p38 = scmp.eq.s32.totalorder %s35, 0
      %s39 = scalar_select %p38, %s31, 1
      %s40 = ssub.s32 %s37, %s39
      %p41 = scmp.eq.s32.totalorder %s40, 0
      %s43 = sadd.s32 %s42, 1
      %s44 = scalar_select %p41, %s42, %s43
      %p47 = pneg %p41
      %p48 = scmp.eq.s32.totalorder %s16, 11
      %p49 = por %p47, %p48
      %p50 = scmp.ne.s32.totalorder %s42, %s45
      %p51 = scmp.eq.s32.totalorder %s16, 0
      %p52 = por %p50, %p51
      %p53 = scmp.ne.s32.totalorder %s42, %s45
      %p54 = scmp.eq.s32.totalorder %s21, 11
      %p55 = por %p53, %p54
      %p56 = scmp.ne.s32.totalorder %s45, %s46
      %p57 = scmp.eq.s32.totalorder %s21, 0
      %p58 = por %p56, %p57
      %p59 = scmp.ne.s32.totalorder %s45, %s46
      %p60 = scmp.eq.s32.totalorder %s22, 11
      %p61 = por %p59, %p60
      %p63 = scmp.ne.s32.totalorder %s46, %s62
      %p64 = scmp.eq.s32.totalorder %s22, 0
      %p65 = por %p63, %p64
      %s67 = sadd.s32 %s66, 1
      %p70 = scmp.eq.s32.totalorder %s16, 11
      %p71 = scmp.ne.s32.totalorder %s66, %s68
      %p72 = scmp.eq.s32.totalorder %s16, 0
      %p73 = por %p71, %p72
      %p74 = scmp.ne.s32.totalorder %s66, %s68
      %p75 = scmp.eq.s32.totalorder %s21, 11
      %p76 = por %p74, %p75
      %p77 = scmp.ne.s32.totalorder %s68, %s69
      %p78 = scmp.eq.s32.totalorder %s21, 0
      %p79 = por %p77, %p78
      %p80 = scmp.ne.s32.totalorder %s68, %s69
      %p81 = scmp.eq.s32.totalorder %s22, 11
      %p82 = por %p80, %p81
      %p84 = scmp.ne.s32.totalorder %s69, %s83
      %p85 = scmp.eq.s32.totalorder %s22, 0
      %p86 = por %p84, %p85
      %s88 = sadd.s32 %s87, 1
      %p91 = scmp.eq.s32.totalorder %s16, 11
      %p92 = scmp.ne.s32.totalorder %s87, %s89
      %p93 = scmp.eq.s32.totalorder %s16, 0
      %p94 = por %p92, %p93
      %p95 = scmp.ne.s32.totalorder %s87, %s89
      %p96 = scmp.eq.s32.totalorder %s21, 11
      %p97 = por %p95, %p96
      %p98 = scmp.ne.s32.totalorder %s89, %s90
      %p99 = scmp.eq.s32.totalorder %s21, 0
      %p100 = por %p98, %p99
      %p101 = scmp.ne.s32.totalorder %s89, %s90
      %p102 = scmp.eq.s32.totalorder %s22, 11
      %p103 = por %p101, %p102
      %p105 = scmp.ne.s32.totalorder %s90, %s104
      %p106 = scmp.eq.s32.totalorder %s22, 0
      %p107 = por %p105, %p106
      %p108 = scmp.eq.s32.totalorder %s23, 5
      %s109 = scalar_select %p108, %s24, 0
      %p110 = scmp.eq.s32.totalorder %s35, 5
      %s111 = scalar_select %p110, %s31, 0
      %s112 = ssub.s32 %s109, %s111
      %p113 = scmp.eq.s32.totalorder %s112, 0
      %s115 = sadd.s32 %s114, 1
      %s116 = scalar_select %p113, %s114, %s115
      %p119 = pneg %p113
      %p120 = scmp.eq.s32.totalorder %s16, 11
      %p121 = por %p119, %p120
      %p122 = scmp.ne.s32.totalorder %s114, %s117
      %p123 = scmp.eq.s32.totalorder %s16, 0
      %p124 = por %p122, %p123
      %p125 = scmp.ne.s32.totalorder %s114, %s117
      %p126 = scmp.eq.s32.totalorder %s21, 11
      %p127 = por %p125, %p126
      %p128 = scmp.ne.s32.totalorder %s117, %s118
      %p129 = scmp.eq.s32.totalorder %s21, 0
      %p130 = por %p128, %p129
      %p131 = scmp.ne.s32.totalorder %s117, %s118
      %p132 = scmp.eq.s32.totalorder %s22, 11
      %p133 = por %p131, %p132
      %p135 = scmp.ne.s32.totalorder %s118, %s134
      %p136 = scmp.eq.s32.totalorder %s22, 0
      %p137 = por %p135, %p136
      %p138 = scmp.le.s32.totalorder 1, %s16
      %p139 = scmp.lt.s32.totalorder %s16, 13
      %p140 = pnand %p138, %p139
      %p141 = pneg %p140
      // Predicated region
      $region9: #{tpu_custom_call.1} parent=5 // pred_check
        _
      $region10: #{tpu_custom_call.1} parent=5 // pred_check_branch
        %143 = sbr.rel (%p140) target = $region12
      $region11: #{tpu_custom_call.1} parent=5 // pred_region
        %s144 = ssub.s32 %s16, 1
        // Predicated region
        $region13: #{tpu_custom_call.1} parent=11 // pred_check
          %p145 = pneg %p79
        $region14: #{tpu_custom_call.1} parent=11 // pred_check_branch
          %147 = sbr.rel (%p145) target = $region16
        $region15: #{tpu_custom_call.1} parent=11 // pred_region
          %149 = vsyncadd [#allocation11], 0
          %s150 = sshll.u32 %s1, 4
          %s151 = int_to_ptr.hbm [resolvable:$true] %s150
          %s152 = sshll.u32 [#allocation10], 4
          %s153 = int_to_ptr.vmem [resolvable:$true] %s152
          %158 = dma.hbm_to_vmem [thread:$0]  %s151, 5120, %s153, [#allocation11], 64, 64, 4
        $region16: #{tpu_custom_call.1} parent=11 // pred_fallthru
          _
        // Predicated region
        $region17: #{tpu_custom_call.1} parent=11 // pred_check
          %p159 = pneg %p100
        $region18: #{tpu_custom_call.1} parent=11 // pred_check_branch
          %161 = sbr.rel (%p159) target = $region20
        $region19: #{tpu_custom_call.1} parent=11 // pred_region
          %163 = vsyncadd [#allocation11], 0
          %s164 = sshll.u32 %s2, 4
          %s165 = int_to_ptr.hbm [resolvable:$true] %s164
          %s166 = sshll.u32 [#allocation12], 4
          %s167 = int_to_ptr.vmem [resolvable:$true] %s166
          %172 = dma.hbm_to_vmem [thread:$0]  %s165, 256, %s167, [#allocation11], 128, 128, 8
        $region20: #{tpu_custom_call.1} parent=11 // pred_fallthru
          _
      $region12: #{tpu_custom_call.1} parent=5 // pred_fallthru
        _
      %p173 = scmp.lt.s32.totalorder %s16, 12
      // Predicated region
      $region21: #{tpu_custom_call.1} parent=5 // pred_check
        %p174 = pneg %p173
      $region22: #{tpu_custom_call.1} parent=5 // pred_check_branch
        %176 = sbr.rel (%p174) target = $region24
      $region23: #{tpu_custom_call.1} parent=5 // pred_region
        // Predicated region
        $region25: #{tpu_custom_call.1} parent=23 // pred_check
          %p177 = pneg %p52
        $region26: #{tpu_custom_call.1} parent=23 // pred_check_branch
          %179 = sbr.rel (%p177) target = $region28
        $region27: #{tpu_custom_call.1} parent=23 // pred_region
          %s180 = sand.u32 %s42, 1
          %s181 = scalar_lea.sflag [#allocation8], %s180
          %s182 = sand.u32 %s42, 1
          %s183 = smul.addr %s182, 512
          %s184 = scalar_lea.vmem [#allocation7], %s183
          %p185 = scmp.eq.s32.totalorder %s23, 0
          %s186 = scalar_select %p185, %s24, 1
          %s187 = smul.u32 64, %s186
          %189 = vsyncadd %s181, 0
          %s190 = smul.addr %s187, 8
          %s191 = scalar_lea.hbm %s0, %s190
          %s192 = sshll.u32 %s191, 4
          %s193 = int_to_ptr.hbm [resolvable:$true] %s192
          %s194 = sshll.u32 %s184, 4
          %s195 = int_to_ptr.vmem [resolvable:$true] %s194
          %200 = dma.hbm_to_vmem [thread:$0]  %s193, 8192, %s195, %s181, 128, 128, 8
        $region28: #{tpu_custom_call.1} parent=23 // pred_fallthru
          _
      $region24: #{tpu_custom_call.1} parent=5 // pred_fallthru
        _
      %p201 = scmp.le.s32.totalorder 1, %s16
      %p202 = scmp.lt.s32.totalorder %s16, 13
      %p203 = pnand %p201, %p202
      %p204 = pneg %p203
      // Predicated region
      $region29: #{tpu_custom_call.1} parent=5 // pred_check
        _
      $region30: #{tpu_custom_call.1} parent=5 // pred_check_branch
        %206 = sbr.rel (%p203) target = $region32
      $region31: #{tpu_custom_call.1} parent=5 // pred_region
        %s207 = ssub.s32 %s16, 1
        %s208 = sand.u32 %s45, 1
        %s209 = scalar_lea.sflag [#allocation8], %s208
        %s210 = sand.u32 %s45, 1
        %s211 = smul.addr %s210, 512
        %s212 = scalar_lea.vmem [#allocation7], %s211
        // Predicated region
        $region33: #{tpu_custom_call.1} parent=31 // pred_check
          %p213 = pneg %p58
        $region34: #{tpu_custom_call.1} parent=31 // pred_check_branch
          %215 = sbr.rel (%p213) target = $region36
        $region35: #{tpu_custom_call.1} parent=31 // pred_region
          %217 = dma.done %s209, 8192
        $region36: #{tpu_custom_call.1} parent=31 // pred_fallthru
          _
        // Predicated region
        $region37: #{tpu_custom_call.1} parent=31 // pred_check
          %p218 = pneg %p79
        $region38: #{tpu_custom_call.1} parent=31 // pred_check_branch
          %220 = sbr.rel (%p218) target = $region40
        $region39: #{tpu_custom_call.1} parent=31 // pred_region
          %222 = dma.done [#allocation11], 5120
        $region40: #{tpu_custom_call.1} parent=31 // pred_fallthru
          _
        // Predicated region
        $region41: #{tpu_custom_call.1} parent=31 // pred_check
          %p223 = pneg %p100
        $region42: #{tpu_custom_call.1} parent=31 // pred_check_branch
          %225 = sbr.rel (%p223) target = $region44
        $region43: #{tpu_custom_call.1} parent=31 // pred_region
          %227 = dma.done [#allocation11], 256
        $region44: #{tpu_custom_call.1} parent=31 // pred_fallthru
          _
        %s228 = sand.u32 %s45, 1
        %s229 = scalar_lea.sflag [#allocation8], %s228
        %s230 = sand.u32 %s45, 1
        %s231 = smul.addr %s230, 512
        %s232 = scalar_lea.vmem [#allocation7], %s231
        %p233 = pneg %p58
        %p234 = pneg %p55
        %p235 = pneg %p79
        %p236 = pneg %p76
        %p237 = pneg %p100
        %p238 = pneg %p97
        %p239 = pneg %p130
        %p240 = pneg %p127
        %s241 = sand.u32 %s117, 1
        %s242 = scalar_lea.sflag [#allocation9], %s241
        %s243 = sand.u32 %s117, 1
        %s244 = smul.addr %s243, 4
        %s245 = scalar_lea.vmem [#allocation13], %s244
        %p246 = scmp.eq.s32.totalorder %s25, 0
        %s247 = scalar_select %p246, %s26, 1
        %s248 = smul.u32 64, %s247
        %p249 = scmp.eq.s32.totalorder %s25, 5
        %s250 = scalar_select %p249, %s26, 0
        %s251 = smul.u32 %s26, 512
        %p252 = scmp.eq.s32.totalorder %s26, 0
        %p253 = scmp.gt.s32.totalorder %s25, 0
        %p254 = pnand %p252, %p253
        %p255 = pneg %p254
        // Predicated region
        $region45: #{tpu_custom_call.1} parent=31 // pred_check
          _
        $region46: #{tpu_custom_call.1} parent=31 // pred_check_branch
          %257 = sbr.rel (%p254) target = $region48
        $region47: #{tpu_custom_call.1} parent=31 // pred_region
          %v258 = vld [vmem:[#allocation3] sm:$0x1]
          %v259 = vmul.f32 %v258, 0.0009765625
          %v260 = vld [vmem:[#allocation4] sm:$0x1]
          %v261 = vmul.f32 %v260, 0.0009765625
          %v262 = vmul.f32 %v259, %v259
          %v263 = vsub.f32 %v261, %v262
          %v264 = vadd.f32 %v263, 1e-05
          %v265 = vrsqrt.pop %v264
          %v266 = vmul.f32 %v265, %v264
          %v267 = vmul.f32 %v266, %v265
          %v268 = vmul.f32 0.5, %v267
          %v269 = vsub.f32 1.5, %v268
          %v270 = vmul.f32 %v265, %v269
          %vm271 = vweird.f32 %v264
          %vm272 = vweird.f32 %v265
          %vm273 = vmor %vm271, %vm272
          %v274 = vsel %vm273, %v265, %v270
          %s275 = ssub.s32 %s25, 1
          %s276 = scalar_lea.vmem [#allocation12], %s275
          %v277 = vld [vmem:[%s276] sm:$0x1]
          %s278 = sadd.s32 %s25, 4
          %s279 = scalar_lea.vmem [#allocation12], %s278
          %v280 = vld [vmem:[%s279] sm:$0x1]
          %v281 = vmul.f32 %v274, %v277
          %282 = vst [vmem:[#allocation5] sm:$0x1] %v281
          %v283 = vmul.f32 %v259, %v281
          %v284 = vsub.f32 %v280, %v283
          %285 = vst [vmem:[#allocation6] sm:$0x1] %v284
        $region48: #{tpu_custom_call.1} parent=31 // pred_fallthru
          _
        // Predicated region
        $region49: #{tpu_custom_call.1} parent=31 // pred_check
          %p286 = pneg %p252
        $region50: #{tpu_custom_call.1} parent=31 // pred_check_branch
          %288 = sbr.rel (%p286) target = $region52
        $region51: #{tpu_custom_call.1} parent=31 // pred_region
          %289 = vst [vmem:[#allocation3] sm:$0x1] 0.0
          %290 = vst [vmem:[#allocation4] sm:$0x1] 0.0
        $region52: #{tpu_custom_call.1} parent=31 // pred_fallthru
          _
        %p291 = scmp.eq.s32.totalorder %s25, 0
        // Predicated region
        $region53: #{tpu_custom_call.1} parent=31 // pred_check
          %p292 = pneg %p291
        $region54: #{tpu_custom_call.1} parent=31 // pred_check_branch
          %294 = sbr.rel (%p292) target = $region56
        $region55: #{tpu_custom_call.1} parent=31 // pred_region
          %v295 = vld [vmem:[%s212] sm:$0xff]
          %v296 = vld [vmem:[%s212 + $0x8] sm:$0xff]
          %v297 = vld [vmem:[%s212 + $0x10] sm:$0xff]
          %v298 = vld [vmem:[%s212 + $0x18] sm:$0xff]
          %v299 = vld [vmem:[%s212 + $0x20] sm:$0xff]
          %v300 = vld [vmem:[%s212 + $0x28] sm:$0xff]
          %v301 = vld [vmem:[%s212 + $0x30] sm:$0xff]
          %v302 = vld [vmem:[%s212 + $0x38] sm:$0xff]
          %v303 = vld [vmem:[%s212 + $0x40] sm:$0xff]
          %v304 = vld [vmem:[%s212 + $0x48] sm:$0xff]
          %v305 = vld [vmem:[%s212 + $0x50] sm:$0xff]
          %v306 = vld [vmem:[%s212 + $0x58] sm:$0xff]
          %v307 = vld [vmem:[%s212 + $0x60] sm:$0xff]
          %v308 = vld [vmem:[%s212 + $0x68] sm:$0xff]
          %v309 = vld [vmem:[%s212 + $0x70] sm:$0xff]
          %v310 = vld [vmem:[%s212 + $0x78] sm:$0xff]
          %v311 = vld [vmem:[%s212 + $0x80] sm:$0xff]
          %v312 = vld [vmem:[%s212 + $0x88] sm:$0xff]
          %v313 = vld [vmem:[%s212 + $0x90] sm:$0xff]
          %v314 = vld [vmem:[%s212 + $0x98] sm:$0xff]
          %v315 = vld [vmem:[%s212 + $0xa0] sm:$0xff]
          %v316 = vld [vmem:[%s212 + $0xa8] sm:$0xff]
          %v317 = vld [vmem:[%s212 + $0xb0] sm:$0xff]
          %v318 = vld [vmem:[%s212 + $0xb8] sm:$0xff]
          %v319 = vld [vmem:[%s212 + $0xc0] sm:$0xff]
          %v320 = vld [vmem:[%s212 + $0xc8] sm:$0xff]
          %v321 = vld [vmem:[%s212 + $0xd0] sm:$0xff]
          %v322 = vld [vmem:[%s212 + $0xd8] sm:$0xff]
          %v323 = vld [vmem:[%s212 + $0xe0] sm:$0xff]
          %v324 = vld [vmem:[%s212 + $0xe8] sm:$0xff]
          %v325 = vld [vmem:[%s212 + $0xf0] sm:$0xff]
          %v326 = vld [vmem:[%s212 + $0xf8] sm:$0xff]
          %v327 = vld [vmem:[%s212 + $0x100] sm:$0xff]
          %v328 = vld [vmem:[%s212 + $0x108] sm:$0xff]
          %v329 = vld [vmem:[%s212 + $0x110] sm:$0xff]
          %v330 = vld [vmem:[%s212 + $0x118] sm:$0xff]
          %v331 = vld [vmem:[%s212 + $0x120] sm:$0xff]
          %v332 = vld [vmem:[%s212 + $0x128] sm:$0xff]
          %v333 = vld [vmem:[%s212 + $0x130] sm:$0xff]
          %v334 = vld [vmem:[%s212 + $0x138] sm:$0xff]
          %v335 = vld [vmem:[%s212 + $0x140] sm:$0xff]
          %v336 = vld [vmem:[%s212 + $0x148] sm:$0xff]
          %v337 = vld [vmem:[%s212 + $0x150] sm:$0xff]
          %v338 = vld [vmem:[%s212 + $0x158] sm:$0xff]
          %v339 = vld [vmem:[%s212 + $0x160] sm:$0xff]
          %v340 = vld [vmem:[%s212 + $0x168] sm:$0xff]
          %v341 = vld [vmem:[%s212 + $0x170] sm:$0xff]
          %v342 = vld [vmem:[%s212 + $0x178] sm:$0xff]
          %v343 = vld [vmem:[%s212 + $0x180] sm:$0xff]
          %v344 = vld [vmem:[%s212 + $0x188] sm:$0xff]
          %v345 = vld [vmem:[%s212 + $0x190] sm:$0xff]
          %v346 = vld [vmem:[%s212 + $0x198] sm:$0xff]
          %v347 = vld [vmem:[%s212 + $0x1a0] sm:$0xff]
          %v348 = vld [vmem:[%s212 + $0x1a8] sm:$0xff]
          %v349 = vld [vmem:[%s212 + $0x1b0] sm:$0xff]
          %v350 = vld [vmem:[%s212 + $0x1b8] sm:$0xff]
          %v351 = vld [vmem:[%s212 + $0x1c0] sm:$0xff]
          %v352 = vld [vmem:[%s212 + $0x1c8] sm:$0xff]
          %v353 = vld [vmem:[%s212 + $0x1d0] sm:$0xff]
          %v354 = vld [vmem:[%s212 + $0x1d8] sm:$0xff]
          %v355 = vld [vmem:[%s212 + $0x1e0] sm:$0xff]
          %v356 = vld [vmem:[%s212 + $0x1e8] sm:$0xff]
          %v357 = vld [vmem:[%s212 + $0x1f0] sm:$0xff]
          %v358 = vld [vmem:[%s212 + $0x1f8] sm:$0xff]
          %s359 = scalar_lea.vmem [#allocation2], %s251
          %360 = vst [vmem:[%s359] sm:$0xff] %v295
          %361 = vst [vmem:[%s359 + $0x8] sm:$0xff] %v296
          %362 = vst [vmem:[%s359 + $0x10] sm:$0xff] %v297
          %363 = vst [vmem:[%s359 + $0x18] sm:$0xff] %v298
          %364 = vst [vmem:[%s359 + $0x20] sm:$0xff] %v299
          %365 = vst [vmem:[%s359 + $0x28] sm:$0xff] %v300
          %366 = vst [vmem:[%s359 + $0x30] sm:$0xff] %v301
          %367 = vst [vmem:[%s359 + $0x38] sm:$0xff] %v302
          %368 = vst [vmem:[%s359 + $0x40] sm:$0xff] %v303
          %369 = vst [vmem:[%s359 + $0x48] sm:$0xff] %v304
          %370 = vst [vmem:[%s359 + $0x50] sm:$0xff] %v305
          %371 = vst [vmem:[%s359 + $0x58] sm:$0xff] %v306
          %372 = vst [vmem:[%s359 + $0x60] sm:$0xff] %v307
          %373 = vst [vmem:[%s359 + $0x68] sm:$0xff] %v308
          %374 = vst [vmem:[%s359 + $0x70] sm:$0xff] %v309
          %375 = vst [vmem:[%s359 + $0x78] sm:$0xff] %v310
          %376 = vst [vmem:[%s359 + $0x80] sm:$0xff] %v311
          %377 = vst [vmem:[%s359 + $0x88] sm:$0xff] %v312
          %378 = vst [vmem:[%s359 + $0x90] sm:$0xff] %v313
          %379 = vst [vmem:[%s359 + $0x98] sm:$0xff] %v314
          %380 = vst [vmem:[%s359 + $0xa0] sm:$0xff] %v315
          %381 = vst [vmem:[%s359 + $0xa8] sm:$0xff] %v316
          %382 = vst [vmem:[%s359 + $0xb0] sm:$0xff] %v317
          %383 = vst [vmem:[%s359 + $0xb8] sm:$0xff] %v318
          %384 = vst [vmem:[%s359 + $0xc0] sm:$0xff] %v319
          %385 = vst [vmem:[%s359 + $0xc8] sm:$0xff] %v320
          %386 = vst [vmem:[%s359 + $0xd0] sm:$0xff] %v321
          %387 = vst [vmem:[%s359 + $0xd8] sm:$0xff] %v322
          %388 = vst [vmem:[%s359 + $0xe0] sm:$0xff] %v323
          %389 = vst [vmem:[%s359 + $0xe8] sm:$0xff] %v324
          %390 = vst [vmem:[%s359 + $0xf0] sm:$0xff] %v325
          %391 = vst [vmem:[%s359 + $0xf8] sm:$0xff] %v326
          %392 = vst [vmem:[%s359 + $0x100] sm:$0xff] %v327
          %393 = vst [vmem:[%s359 + $0x108] sm:$0xff] %v328
          %394 = vst [vmem:[%s359 + $0x110] sm:$0xff] %v329
          %395 = vst [vmem:[%s359 + $0x118] sm:$0xff] %v330
          %396 = vst [vmem:[%s359 + $0x120] sm:$0xff] %v331
          %397 = vst [vmem:[%s359 + $0x128] sm:$0xff] %v332
          %398 = vst [vmem:[%s359 + $0x130] sm:$0xff] %v333
          %399 = vst [vmem:[%s359 + $0x138] sm:$0xff] %v334
          %400 = vst [vmem:[%s359 + $0x140] sm:$0xff] %v335
          %401 = vst [vmem:[%s359 + $0x148] sm:$0xff] %v336
          %402 = vst [vmem:[%s359 + $0x150] sm:$0xff] %v337
          %403 = vst [vmem:[%s359 + $0x158] sm:$0xff] %v338
          %404 = vst [vmem:[%s359 + $0x160] sm:$0xff] %v339
          %405 = vst [vmem:[%s359 + $0x168] sm:$0xff] %v340
          %406 = vst [vmem:[%s359 + $0x170] sm:$0xff] %v341
          %407 = vst [vmem:[%s359 + $0x178] sm:$0xff] %v342
          %408 = vst [vmem:[%s359 + $0x180] sm:$0xff] %v343
          %409 = vst [vmem:[%s359 + $0x188] sm:$0xff] %v344
          %410 = vst [vmem:[%s359 + $0x190] sm:$0xff] %v345
          %411 = vst [vmem:[%s359 + $0x198] sm:$0xff] %v346
          %412 = vst [vmem:[%s359 + $0x1a0] sm:$0xff] %v347
          %413 = vst [vmem:[%s359 + $0x1a8] sm:$0xff] %v348
          %414 = vst [vmem:[%s359 + $0x1b0] sm:$0xff] %v349
          %415 = vst [vmem:[%s359 + $0x1b8] sm:$0xff] %v350
          %416 = vst [vmem:[%s359 + $0x1c0] sm:$0xff] %v351
          %417 = vst [vmem:[%s359 + $0x1c8] sm:$0xff] %v352
          %418 = vst [vmem:[%s359 + $0x1d0] sm:$0xff] %v353
          %419 = vst [vmem:[%s359 + $0x1d8] sm:$0xff] %v354
          %420 = vst [vmem:[%s359 + $0x1e0] sm:$0xff] %v355
          %421 = vst [vmem:[%s359 + $0x1e8] sm:$0xff] %v356
          %422 = vst [vmem:[%s359 + $0x1f0] sm:$0xff] %v357
          %423 = vst [vmem:[%s359 + $0x1f8] sm:$0xff] %v358
          %v424 = vld [vmem:[#allocation3] sm:$0x1]
          %v425 = vadd.f32 %v295, %v296
          %v426 = vadd.f32 %v425, %v297
          %v427 = vadd.f32 %v426, %v298
          %v428 = vadd.f32 %v427, %v299
          %v429 = vadd.f32 %v428, %v300
          %v430 = vadd.f32 %v429, %v301
          %v431 = vadd.f32 %v430, %v302
          %v432 = vadd.f32 %v431, %v303
          %v433 = vadd.f32 %v432, %v304
          %v434 = vadd.f32 %v433, %v305
          %v435 = vadd.f32 %v434, %v306
          %v436 = vadd.f32 %v435, %v307
          %v437 = vadd.f32 %v436, %v308
          %v438 = vadd.f32 %v437, %v309
          %v439 = vadd.f32 %v438, %v310
          %v440 = vadd.f32 %v439, %v311
          %v441 = vadd.f32 %v440, %v312
          %v442 = vadd.f32 %v441, %v313
          %v443 = vadd.f32 %v442, %v314
          %v444 = vadd.f32 %v443, %v315
          %v445 = vadd.f32 %v444, %v316
          %v446 = vadd.f32 %v445, %v317
          %v447 = vadd.f32 %v446, %v318
          %v448 = vadd.f32 %v447, %v319
          %v449 = vadd.f32 %v448, %v320
          %v450 = vadd.f32 %v449, %v321
          %v451 = vadd.f32 %v450, %v322
          %v452 = vadd.f32 %v451, %v323
          %v453 = vadd.f32 %v452, %v324
          %v454 = vadd.f32 %v453, %v325
          %v455 = vadd.f32 %v454, %v326
          %v456 = vadd.f32 %v455, %v327
          %v457 = vadd.f32 %v456, %v328
          %v458 = vadd.f32 %v457, %v329
          %v459 = vadd.f32 %v458, %v330
          %v460 = vadd.f32 %v459, %v331
          %v461 = vadd.f32 %v460, %v332
          %v462 = vadd.f32 %v461, %v333
          %v463 = vadd.f32 %v462, %v334
          %v464 = vadd.f32 %v463, %v335
          %v465 = vadd.f32 %v464, %v336
          %v466 = vadd.f32 %v465, %v337
          %v467 = vadd.f32 %v466, %v338
          %v468 = vadd.f32 %v467, %v339
          %v469 = vadd.f32 %v468, %v340
          %v470 = vadd.f32 %v469, %v341
          %v471 = vadd.f32 %v470, %v342
          %v472 = vadd.f32 %v471, %v343
          %v473 = vadd.f32 %v472, %v344
          %v474 = vadd.f32 %v473, %v345
          %v475 = vadd.f32 %v474, %v346
          %v476 = vadd.f32 %v475, %v347
          %v477 = vadd.f32 %v476, %v348
          %v478 = vadd.f32 %v477, %v349
          %v479 = vadd.f32 %v478, %v350
          %v480 = vadd.f32 %v479, %v351
          %v481 = vadd.f32 %v480, %v352
          %v482 = vadd.f32 %v481, %v353
          %v483 = vadd.f32 %v482, %v354
          %v484 = vadd.f32 %v483, %v355
          %v485 = vadd.f32 %v484, %v356
          %v486 = vadd.f32 %v485, %v357
          %v487 = vadd.f32 %v486, %v358
          %v488 = vrot.slane %v487, 4
          %v489 = vadd.f32 %v487, %v488
          %v490 = vrot.slane %v489, 2
          %v491 = vadd.f32 %v489, %v490
          %v492 = vrot.slane %v491, 1
          %v493 = vadd.f32 %v491, %v492
          %v494 = vadd.f32 %v424, %v493
          %495 = vst [vmem:[#allocation3] sm:$0x1] %v494
          %v496 = vld [vmem:[#allocation4] sm:$0x1]
          %v497 = vmul.f32 %v295, %v295
          %v498 = vmul.f32 %v296, %v296
          %v499 = vmul.f32 %v297, %v297
          %v500 = vmul.f32 %v298, %v298
          %v501 = vmul.f32 %v299, %v299
          %v502 = vmul.f32 %v300, %v300
          %v503 = vmul.f32 %v301, %v301
          %v504 = vmul.f32 %v302, %v302
          %v505 = vmul.f32 %v303, %v303
          %v506 = vmul.f32 %v304, %v304
          %v507 = vmul.f32 %v305, %v305
          %v508 = vmul.f32 %v306, %v306
          %v509 = vmul.f32 %v307, %v307
          %v510 = vmul.f32 %v308, %v308
          %v511 = vmul.f32 %v309, %v309
          %v512 = vmul.f32 %v310, %v310
          %v513 = vmul.f32 %v311, %v311
          %v514 = vmul.f32 %v312, %v312
          %v515 = vmul.f32 %v313, %v313
          %v516 = vmul.f32 %v314, %v314
          %v517 = vmul.f32 %v315, %v315
          %v518 = vmul.f32 %v316, %v316
          %v519 = vmul.f32 %v317, %v317
          %v520 = vmul.f32 %v318, %v318
          %v521 = vmul.f32 %v319, %v319
          %v522 = vmul.f32 %v320, %v320
          %v523 = vmul.f32 %v321, %v321
          %v524 = vmul.f32 %v322, %v322
          %v525 = vmul.f32 %v323, %v323
          %v526 = vmul.f32 %v324, %v324
          %v527 = vmul.f32 %v325, %v325
          %v528 = vmul.f32 %v326, %v326
          %v529 = vmul.f32 %v327, %v327
          %v530 = vmul.f32 %v328, %v328
          %v531 = vmul.f32 %v329, %v329
          %v532 = vmul.f32 %v330, %v330
          %v533 = vmul.f32 %v331, %v331
          %v534 = vmul.f32 %v332, %v332
          %v535 = vmul.f32 %v333, %v333
          %v536 = vmul.f32 %v334, %v334
          %v537 = vmul.f32 %v335, %v335
          %v538 = vmul.f32 %v336, %v336
          %v539 = vmul.f32 %v337, %v337
          %v540 = vmul.f32 %v338, %v338
          %v541 = vmul.f32 %v339, %v339
          %v542 = vmul.f32 %v340, %v340
          %v543 = vmul.f32 %v341, %v341
          %v544 = vmul.f32 %v342, %v342
          %v545 = vmul.f32 %v343, %v343
          %v546 = vmul.f32 %v344, %v344
          %v547 = vmul.f32 %v345, %v345
          %v548 = vmul.f32 %v346, %v346
          %v549 = vmul.f32 %v347, %v347
          %v550 = vmul.f32 %v348, %v348
          %v551 = vmul.f32 %v349, %v349
          %v552 = vmul.f32 %v350, %v350
          %v553 = vmul.f32 %v351, %v351
          %v554 = vmul.f32 %v352, %v352
          %v555 = vmul.f32 %v353, %v353
          %v556 = vmul.f32 %v354, %v354
          %v557 = vmul.f32 %v355, %v355
          %v558 = vmul.f32 %v356, %v356
          %v559 = vmul.f32 %v357, %v357
          %v560 = vmul.f32 %v358, %v358
          %v561 = vadd.f32 %v497, %v498
          %v562 = vadd.f32 %v561, %v499
          %v563 = vadd.f32 %v562, %v500
          %v564 = vadd.f32 %v563, %v501
          %v565 = vadd.f32 %v564, %v502
          %v566 = vadd.f32 %v565, %v503
          %v567 = vadd.f32 %v566, %v504
          %v568 = vadd.f32 %v567, %v505
          %v569 = vadd.f32 %v568, %v506
          %v570 = vadd.f32 %v569, %v507
          %v571 = vadd.f32 %v570, %v508
          %v572 = vadd.f32 %v571, %v509
          %v573 = vadd.f32 %v572, %v510
          %v574 = vadd.f32 %v573, %v511
          %v575 = vadd.f32 %v574, %v512
          %v576 = vadd.f32 %v575, %v513
          %v577 = vadd.f32 %v576, %v514
          %v578 = vadd.f32 %v577, %v515
          %v579 = vadd.f32 %v578, %v516
          %v580 = vadd.f32 %v579, %v517
          %v581 = vadd.f32 %v580, %v518
          %v582 = vadd.f32 %v581, %v519
          %v583 = vadd.f32 %v582, %v520
          %v584 = vadd.f32 %v583, %v521
          %v585 = vadd.f32 %v584, %v522
          %v586 = vadd.f32 %v585, %v523
          %v587 = vadd.f32 %v586, %v524
          %v588 = vadd.f32 %v587, %v525
          %v589 = vadd.f32 %v588, %v526
          %v590 = vadd.f32 %v589, %v527
          %v591 = vadd.f32 %v590, %v528
          %v592 = vadd.f32 %v591, %v529
          %v593 = vadd.f32 %v592, %v530
          %v594 = vadd.f32 %v593, %v531
          %v595 = vadd.f32 %v594, %v532
          %v596 = vadd.f32 %v595, %v533
          %v597 = vadd.f32 %v596, %v534
          %v598 = vadd.f32 %v597, %v535
          %v599 = vadd.f32 %v598, %v536
          %v600 = vadd.f32 %v599, %v537
          %v601 = vadd.f32 %v600, %v538
          %v602 = vadd.f32 %v601, %v539
          %v603 = vadd.f32 %v602, %v540
          %v604 = vadd.f32 %v603, %v541
          %v605 = vadd.f32 %v604, %v542
          %v606 = vadd.f32 %v605, %v543
          %v607 = vadd.f32 %v606, %v544
          %v608 = vadd.f32 %v607, %v545
          %v609 = vadd.f32 %v608, %v546
          %v610 = vadd.f32 %v609, %v547
          %v611 = vadd.f32 %v610, %v548
          %v612 = vadd.f32 %v611, %v549
          %v613 = vadd.f32 %v612, %v550
          %v614 = vadd.f32 %v613, %v551
          %v615 = vadd.f32 %v614, %v552
          %v616 = vadd.f32 %v615, %v553
          %v617 = vadd.f32 %v616, %v554
          %v618 = vadd.f32 %v617, %v555
          %v619 = vadd.f32 %v618, %v556
          %v620 = vadd.f32 %v619, %v557
          %v621 = vadd.f32 %v620, %v558
          %v622 = vadd.f32 %v621, %v559
          %v623 = vadd.f32 %v622, %v560
          %v624 = vrot.slane %v623, 4
          %v625 = vadd.f32 %v623, %v624
          %v626 = vrot.slane %v625, 2
          %v627 = vadd.f32 %v625, %v626
          %v628 = vrot.slane %v627, 1
          %v629 = vadd.f32 %v627, %v628
          %v630 = vadd.f32 %v496, %v629
          %631 = vst [vmem:[#allocation4] sm:$0x1] %v630
        $region56: #{tpu_custom_call.1} parent=31 // pred_fallthru
          _
        // Predicated region
        $region57: #{tpu_custom_call.1} parent=31 // pred_check
          %p632 = pneg %p253
        $region58: #{tpu_custom_call.1} parent=31 // pred_check_branch
          %634 = sbr.rel (%p632) target = $region60
        $region59: #{tpu_custom_call.1} parent=31 // pred_region
          %s635 = scalar_lea.vmem [#allocation2], %s251
          %v636 = vld [vmem:[%s635] sm:$0xff]
          %v637 = vld [vmem:[%s635 + $0x8] sm:$0xff]
          %v638 = vld [vmem:[%s635 + $0x10] sm:$0xff]
          %v639 = vld [vmem:[%s635 + $0x18] sm:$0xff]
          %v640 = vld [vmem:[%s635 + $0x20] sm:$0xff]
          %v641 = vld [vmem:[%s635 + $0x28] sm:$0xff]
          %v642 = vld [vmem:[%s635 + $0x30] sm:$0xff]
          %v643 = vld [vmem:[%s635 + $0x38] sm:$0xff]
          %v644 = vld [vmem:[%s635 + $0x40] sm:$0xff]
          %v645 = vld [vmem:[%s635 + $0x48] sm:$0xff]
          %v646 = vld [vmem:[%s635 + $0x50] sm:$0xff]
          %v647 = vld [vmem:[%s635 + $0x58] sm:$0xff]
          %v648 = vld [vmem:[%s635 + $0x60] sm:$0xff]
          %v649 = vld [vmem:[%s635 + $0x68] sm:$0xff]
          %v650 = vld [vmem:[%s635 + $0x70] sm:$0xff]
          %v651 = vld [vmem:[%s635 + $0x78] sm:$0xff]
          %v652 = vld [vmem:[%s635 + $0x80] sm:$0xff]
          %v653 = vld [vmem:[%s635 + $0x88] sm:$0xff]
          %v654 = vld [vmem:[%s635 + $0x90] sm:$0xff]
          %v655 = vld [vmem:[%s635 + $0x98] sm:$0xff]
          %v656 = vld [vmem:[%s635 + $0xa0] sm:$0xff]
          %v657 = vld [vmem:[%s635 + $0xa8] sm:$0xff]
          %v658 = vld [vmem:[%s635 + $0xb0] sm:$0xff]
          %v659 = vld [vmem:[%s635 + $0xb8] sm:$0xff]
          %v660 = vld [vmem:[%s635 + $0xc0] sm:$0xff]
          %v661 = vld [vmem:[%s635 + $0xc8] sm:$0xff]
          %v662 = vld [vmem:[%s635 + $0xd0] sm:$0xff]
          %v663 = vld [vmem:[%s635 + $0xd8] sm:$0xff]
          %v664 = vld [vmem:[%s635 + $0xe0] sm:$0xff]
          %v665 = vld [vmem:[%s635 + $0xe8] sm:$0xff]
          %v666 = vld [vmem:[%s635 + $0xf0] sm:$0xff]
          %v667 = vld [vmem:[%s635 + $0xf8] sm:$0xff]
          %v668 = vld [vmem:[%s635 + $0x100] sm:$0xff]
          %v669 = vld [vmem:[%s635 + $0x108] sm:$0xff]
          %v670 = vld [vmem:[%s635 + $0x110] sm:$0xff]
          %v671 = vld [vmem:[%s635 + $0x118] sm:$0xff]
          %v672 = vld [vmem:[%s635 + $0x120] sm:$0xff]
          %v673 = vld [vmem:[%s635 + $0x128] sm:$0xff]
          %v674 = vld [vmem:[%s635 + $0x130] sm:$0xff]
          %v675 = vld [vmem:[%s635 + $0x138] sm:$0xff]
          %v676 = vld [vmem:[%s635 + $0x140] sm:$0xff]
          %v677 = vld [vmem:[%s635 + $0x148] sm:$0xff]
          %v678 = vld [vmem:[%s635 + $0x150] sm:$0xff]
          %v679 = vld [vmem:[%s635 + $0x158] sm:$0xff]
          %v680 = vld [vmem:[%s635 + $0x160] sm:$0xff]
          %v681 = vld [vmem:[%s635 + $0x168] sm:$0xff]
          %v682 = vld [vmem:[%s635 + $0x170] sm:$0xff]
          %v683 = vld [vmem:[%s635 + $0x178] sm:$0xff]
          %v684 = vld [vmem:[%s635 + $0x180] sm:$0xff]
          %v685 = vld [vmem:[%s635 + $0x188] sm:$0xff]
          %v686 = vld [vmem:[%s635 + $0x190] sm:$0xff]
          %v687 = vld [vmem:[%s635 + $0x198] sm:$0xff]
          %v688 = vld [vmem:[%s635 + $0x1a0] sm:$0xff]
          %v689 = vld [vmem:[%s635 + $0x1a8] sm:$0xff]
          %v690 = vld [vmem:[%s635 + $0x1b0] sm:$0xff]
          %v691 = vld [vmem:[%s635 + $0x1b8] sm:$0xff]
          %v692 = vld [vmem:[%s635 + $0x1c0] sm:$0xff]
          %v693 = vld [vmem:[%s635 + $0x1c8] sm:$0xff]
          %v694 = vld [vmem:[%s635 + $0x1d0] sm:$0xff]
          %v695 = vld [vmem:[%s635 + $0x1d8] sm:$0xff]
          %v696 = vld [vmem:[%s635 + $0x1e0] sm:$0xff]
          %v697 = vld [vmem:[%s635 + $0x1e8] sm:$0xff]
          %v698 = vld [vmem:[%s635 + $0x1f0] sm:$0xff]
          %v699 = vld [vmem:[%s635 + $0x1f8] sm:$0xff]
          %s700 = sadd.s32 %s25, 9
          %s701 = scalar_lea.vmem [#allocation12], %s700
          %v702 = vld [vmem:[%s701] sm:$0x1]
          %v703 = vld [vmem:[#allocation5] sm:$0x1]
          %v705 = vperm.slane %v703, 0
          %v707 = vmul.f32 %v636, %v705
          %v708 = vmul.f32 %v637, %v705
          %v709 = vmul.f32 %v638, %v705
          %v710 = vmul.f32 %v639, %v705
          %v711 = vmul.f32 %v640, %v705
          %v712 = vmul.f32 %v641, %v705
          %v713 = vmul.f32 %v642, %v705
          %v714 = vmul.f32 %v643, %v705
          %v715 = vmul.f32 %v644, %v705
          %v716 = vmul.f32 %v645, %v705
          %v717 = vmul.f32 %v646, %v705
          %v718 = vmul.f32 %v647, %v705
          %v719 = vmul.f32 %v648, %v705
          %v720 = vmul.f32 %v649, %v705
          %v721 = vmul.f32 %v650, %v705
          %v722 = vmul.f32 %v651, %v705
          %v723 = vmul.f32 %v652, %v705
          %v724 = vmul.f32 %v653, %v705
          %v725 = vmul.f32 %v654, %v705
          %v726 = vmul.f32 %v655, %v705
          %v727 = vmul.f32 %v656, %v705
          %v728 = vmul.f32 %v657, %v705
          %v729 = vmul.f32 %v658, %v705
          %v730 = vmul.f32 %v659, %v705
          %v731 = vmul.f32 %v660, %v705
          %v732 = vmul.f32 %v661, %v705
          %v733 = vmul.f32 %v662, %v705
          %v734 = vmul.f32 %v663, %v705
          %v735 = vmul.f32 %v664, %v705
          %v736 = vmul.f32 %v665, %v705
          %v737 = vmul.f32 %v666, %v705
          %v738 = vmul.f32 %v667, %v705
          %v739 = vmul.f32 %v668, %v705
          %v740 = vmul.f32 %v669, %v705
          %v741 = vmul.f32 %v670, %v705
          %v742 = vmul.f32 %v671, %v705
          %v743 = vmul.f32 %v672, %v705
          %v744 = vmul.f32 %v673, %v705
          %v745 = vmul.f32 %v674, %v705
          %v746 = vmul.f32 %v675, %v705
          %v747 = vmul.f32 %v676, %v705
          %v748 = vmul.f32 %v677, %v705
          %v749 = vmul.f32 %v678, %v705
          %v750 = vmul.f32 %v679, %v705
          %v751 = vmul.f32 %v680, %v705
          %v752 = vmul.f32 %v681, %v705
          %v753 = vmul.f32 %v682, %v705
          %v754 = vmul.f32 %v683, %v705
          %v755 = vmul.f32 %v684, %v705
          %v756 = vmul.f32 %v685, %v705
          %v757 = vmul.f32 %v686, %v705
          %v758 = vmul.f32 %v687, %v705
          %v759 = vmul.f32 %v688, %v705
          %v760 = vmul.f32 %v689, %v705
          %v761 = vmul.f32 %v690, %v705
          %v762 = vmul.f32 %v691, %v705
          %v763 = vmul.f32 %v692, %v705
          %v764 = vmul.f32 %v693, %v705
          %v765 = vmul.f32 %v694, %v705
          %v766 = vmul.f32 %v695, %v705
          %v767 = vmul.f32 %v696, %v705
          %v768 = vmul.f32 %v697, %v705
          %v769 = vmul.f32 %v698, %v705
          %v770 = vmul.f32 %v699, %v705
          %v771 = vld [vmem:[#allocation6] sm:$0x1]
          %v773 = vperm.slane %v771, 0
          %v775 = vadd.f32 %v707, %v773
          %v776 = vadd.f32 %v708, %v773
          %v777 = vadd.f32 %v709, %v773
          %v778 = vadd.f32 %v710, %v773
          %v779 = vadd.f32 %v711, %v773
          %v780 = vadd.f32 %v712, %v773
          %v781 = vadd.f32 %v713, %v773
          %v782 = vadd.f32 %v714, %v773
          %v783 = vadd.f32 %v715, %v773
          %v784 = vadd.f32 %v716, %v773
          %v785 = vadd.f32 %v717, %v773
          %v786 = vadd.f32 %v718, %v773
          %v787 = vadd.f32 %v719, %v773
          %v788 = vadd.f32 %v720, %v773
          %v789 = vadd.f32 %v721, %v773
          %v790 = vadd.f32 %v722, %v773
          %v791 = vadd.f32 %v723, %v773
          %v792 = vadd.f32 %v724, %v773
          %v793 = vadd.f32 %v725, %v773
          %v794 = vadd.f32 %v726, %v773
          %v795 = vadd.f32 %v727, %v773
          %v796 = vadd.f32 %v728, %v773
          %v797 = vadd.f32 %v729, %v773
          %v798 = vadd.f32 %v730, %v773
          %v799 = vadd.f32 %v731, %v773
          %v800 = vadd.f32 %v732, %v773
          %v801 = vadd.f32 %v733, %v773
          %v802 = vadd.f32 %v734, %v773
          %v803 = vadd.f32 %v735, %v773
          %v804 = vadd.f32 %v736, %v773
          %v805 = vadd.f32 %v737, %v773
          %v806 = vadd.f32 %v738, %v773
          %v807 = vadd.f32 %v739, %v773
          %v808 = vadd.f32 %v740, %v773
          %v809 = vadd.f32 %v741, %v773
          %v810 = vadd.f32 %v742, %v773
          %v811 = vadd.f32 %v743, %v773
          %v812 = vadd.f32 %v744, %v773
          %v813 = vadd.f32 %v745, %v773
          %v814 = vadd.f32 %v746, %v773
          %v815 = vadd.f32 %v747, %v773
          %v816 = vadd.f32 %v748, %v773
          %v817 = vadd.f32 %v749, %v773
          %v818 = vadd.f32 %v750, %v773
          %v819 = vadd.f32 %v751, %v773
          %v820 = vadd.f32 %v752, %v773
          %v821 = vadd.f32 %v753, %v773
          %v822 = vadd.f32 %v754, %v773
          %v823 = vadd.f32 %v755, %v773
          %v824 = vadd.f32 %v756, %v773
          %v825 = vadd.f32 %v757, %v773
          %v826 = vadd.f32 %v758, %v773
          %v827 = vadd.f32 %v759, %v773
          %v828 = vadd.f32 %v760, %v773
          %v829 = vadd.f32 %v761, %v773
          %v830 = vadd.f32 %v762, %v773
          %v831 = vadd.f32 %v763, %v773
          %v832 = vadd.f32 %v764, %v773
          %v833 = vadd.f32 %v765, %v773
          %v834 = vadd.f32 %v766, %v773
          %v835 = vadd.f32 %v767, %v773
          %v836 = vadd.f32 %v768, %v773
          %v837 = vadd.f32 %v769, %v773
          %v838 = vadd.f32 %v770, %v773
          %v839 = vpack.c.bf16 %v776, %v775
          %v840 = vpack.c.bf16 %v778, %v777
          %v841 = vpack.c.bf16 %v780, %v779
          %v842 = vpack.c.bf16 %v782, %v781
          %v843 = vpack.c.bf16 %v784, %v783
          %v844 = vpack.c.bf16 %v786, %v785
          %v845 = vpack.c.bf16 %v788, %v787
          %v846 = vpack.c.bf16 %v790, %v789
          %v847 = vpack.c.bf16 %v792, %v791
          %v848 = vpack.c.bf16 %v794, %v793
          %v849 = vpack.c.bf16 %v796, %v795
          %v850 = vpack.c.bf16 %v798, %v797
          %v851 = vpack.c.bf16 %v800, %v799
          %v852 = vpack.c.bf16 %v802, %v801
          %v853 = vpack.c.bf16 %v804, %v803
          %v854 = vpack.c.bf16 %v806, %v805
          %v855 = vpack.c.bf16 %v808, %v807
          %v856 = vpack.c.bf16 %v810, %v809
          %v857 = vpack.c.bf16 %v812, %v811
          %v858 = vpack.c.bf16 %v814, %v813
          %v859 = vpack.c.bf16 %v816, %v815
          %v860 = vpack.c.bf16 %v818, %v817
          %v861 = vpack.c.bf16 %v820, %v819
          %v862 = vpack.c.bf16 %v822, %v821
          %v863 = vpack.c.bf16 %v824, %v823
          %v864 = vpack.c.bf16 %v826, %v825
          %v865 = vpack.c.bf16 %v828, %v827
          %v866 = vpack.c.bf16 %v830, %v829
          %v867 = vpack.c.bf16 %v832, %v831
          %v868 = vpack.c.bf16 %v834, %v833
          %v869 = vpack.c.bf16 %v836, %v835
          %v870 = vpack.c.bf16 %v838, %v837
          %s871 = ssub.s32 %s25, 1
          %s872 = smul.u32 %s871, 16
          %s873 = smul.addr %s872, 4
          %s874 = scalar_lea.vmem [#allocation10], %s873
          %v875 = vld [vmem:[%s874] sm:$0xf]
          %v876 = vld [vmem:[%s874 + $0x4] sm:$0xf]
          %v877 = vld [vmem:[%s874 + $0x8] sm:$0xf]
          %v878 = vld [vmem:[%s874 + $0xc] sm:$0xf]
          %v879 = vld [vmem:[%s874 + $0x10] sm:$0xf]
          %v880 = vld [vmem:[%s874 + $0x14] sm:$0xf]
          %v881 = vld [vmem:[%s874 + $0x18] sm:$0xf]
          %v882 = vld [vmem:[%s874 + $0x1c] sm:$0xf]
          %v883 = vld [vmem:[%s874 + $0x20] sm:$0xf]
          %v884 = vld [vmem:[%s874 + $0x24] sm:$0xf]
          %v885 = vld [vmem:[%s874 + $0x28] sm:$0xf]
          %v886 = vld [vmem:[%s874 + $0x2c] sm:$0xf]
          %v887 = vld [vmem:[%s874 + $0x30] sm:$0xf]
          %v888 = vld [vmem:[%s874 + $0x34] sm:$0xf]
          %v889 = vld [vmem:[%s874 + $0x38] sm:$0xf]
          %v890 = vld [vmem:[%s874 + $0x3c] sm:$0xf]
          %v891 = vperm.slane %v702, 0
          %v908 = vunpack.c.l.b16 %v875
          %v909 = vunpack.c.l.b16 %v876
          %v910 = vunpack.c.l.b16 %v877
          %v911 = vunpack.c.l.b16 %v878
          %v912 = vunpack.c.l.b16 %v879
          %v913 = vunpack.c.l.b16 %v880
          %v914 = vunpack.c.l.b16 %v881
          %v915 = vunpack.c.l.b16 %v882
          %v916 = vunpack.c.l.b16 %v883
          %v917 = vunpack.c.l.b16 %v884
          %v918 = vunpack.c.l.b16 %v885
          %v919 = vunpack.c.l.b16 %v886
          %v920 = vunpack.c.l.b16 %v887
          %v921 = vunpack.c.l.b16 %v888
          %v922 = vunpack.c.l.b16 %v889
          %v923 = vunpack.c.l.b16 %v890
          %v924 = vpack.c.b16 %v909, %v908
          %v925 = vpack.c.b16 %v911, %v910
          %v926 = vpack.c.b16 %v913, %v912
          %v927 = vpack.c.b16 %v915, %v914
          %v928 = vpack.c.b16 %v917, %v916
          %v929 = vpack.c.b16 %v919, %v918
          %v930 = vpack.c.b16 %v921, %v920
          %v931 = vpack.c.b16 %v923, %v922
          %940 = vmatpush.bf16.msra.mxu0 %v931
          %941 = vmatpush.bf16.msra.mxu0 %v930
          %942 = vmatpush.bf16.msra.mxu0 %v929
          %943 = vmatpush.bf16.msra.mxu0 %v928
          %944 = vmatpush.bf16.msra.mxu0 %v927
          %945 = vmatpush.bf16.msra.mxu0 %v926
          %946 = vmatpush.bf16.msra.mxu0 %v925
          %947 = vmatpush.bf16.msra.mxu0 %v924
          %948 = vmatmul.bf16.gmra.mxu0 %v839
          %v949 = vpop.f32.mrf.mxu0
          %v950 = vadd.f32 %v891, %v949
          %v951 = vpop.f32.mrf.mxu0
          %v952 = vadd.f32 %v891, %v951
          %953 = vmatmul.bf16.gmra.mxu0 %v840
          %v954 = vpop.f32.mrf.mxu0
          %v955 = vadd.f32 %v891, %v954
          %v956 = vpop.f32.mrf.mxu0
          %v957 = vadd.f32 %v891, %v956
          %958 = vmatmul.bf16.gmra.mxu0 %v841
          %v959 = vpop.f32.mrf.mxu0
          %v960 = vadd.f32 %v891, %v959
          %v961 = vpop.f32.mrf.mxu0
          %v962 = vadd.f32 %v891, %v961
          %963 = vmatmul.bf16.gmra.mxu0 %v842
          %v964 = vpop.f32.mrf.mxu0
          %v965 = vadd.f32 %v891, %v964
          %v966 = vpop.f32.mrf.mxu0
          %v967 = vadd.f32 %v891, %v966
          %968 = vmatmul.bf16.gmra.mxu0 %v843
          %v969 = vpop.f32.mrf.mxu0
          %v970 = vadd.f32 %v891, %v969
          %v971 = vpop.f32.mrf.mxu0
          %v972 = vadd.f32 %v891, %v971
          %973 = vmatmul.bf16.gmra.mxu0 %v844
          %v974 = vpop.f32.mrf.mxu0
          %v975 = vadd.f32 %v891, %v974
          %v976 = vpop.f32.mrf.mxu0
          %v977 = vadd.f32 %v891, %v976
          %978 = vmatmul.bf16.gmra.mxu0 %v845
          %v979 = vpop.f32.mrf.mxu0
          %v980 = vadd.f32 %v891, %v979
          %v981 = vpop.f32.mrf.mxu0
          %v982 = vadd.f32 %v891, %v981
          %983 = vmatmul.bf16.gmra.mxu0 %v846
          %v984 = vpop.f32.mrf.mxu0
          %v985 = vadd.f32 %v891, %v984
          %v986 = vpop.f32.mrf.mxu0
          %v987 = vadd.f32 %v891, %v986
          %988 = vmatmul.bf16.gmra.mxu0 %v847
          %v989 = vpop.f32.mrf.mxu0
          %v990 = vadd.f32 %v891, %v989
          %v991 = vpop.f32.mrf.mxu0
          %v992 = vadd.f32 %v891, %v991
          %993 = vmatmul.bf16.gmra.mxu0 %v848
          %v994 = vpop.f32.mrf.mxu0
          %v995 = vadd.f32 %v891, %v994
          %v996 = vpop.f32.mrf.mxu0
          %v997 = vadd.f32 %v891, %v996
          %998 = vmatmul.bf16.gmra.mxu0 %v849
          %v999 = vpop.f32.mrf.mxu0
          %v1000 = vadd.f32 %v891, %v999
          %v1001 = vpop.f32.mrf.mxu0
          %v1002 = vadd.f32 %v891, %v1001
          %1003 = vmatmul.bf16.gmra.mxu0 %v850
          %v1004 = vpop.f32.mrf.mxu0
          %v1005 = vadd.f32 %v891, %v1004
          %v1006 = vpop.f32.mrf.mxu0
          %v1007 = vadd.f32 %v891, %v1006
          %1008 = vmatmul.bf16.gmra.mxu0 %v851
          %v1009 = vpop.f32.mrf.mxu0
          %v1010 = vadd.f32 %v891, %v1009
          %v1011 = vpop.f32.mrf.mxu0
          %v1012 = vadd.f32 %v891, %v1011
          %1013 = vmatmul.bf16.gmra.mxu0 %v852
          %v1014 = vpop.f32.mrf.mxu0
          %v1015 = vadd.f32 %v891, %v1014
          %v1016 = vpop.f32.mrf.mxu0
          %v1017 = vadd.f32 %v891, %v1016
          %1018 = vmatmul.bf16.gmra.mxu0 %v853
          %v1019 = vpop.f32.mrf.mxu0
          %v1020 = vadd.f32 %v891, %v1019
          %v1021 = vpop.f32.mrf.mxu0
          %v1022 = vadd.f32 %v891, %v1021
          %1023 = vmatmul.bf16.gmra.mxu0 %v854
          %v1024 = vpop.f32.mrf.mxu0
          %v1025 = vadd.f32 %v891, %v1024
          %v1026 = vpop.f32.mrf.mxu0
          %v1027 = vadd.f32 %v891, %v1026
          %1028 = vmatmul.bf16.gmra.mxu0 %v855
          %v1029 = vpop.f32.mrf.mxu0
          %v1030 = vadd.f32 %v891, %v1029
          %v1031 = vpop.f32.mrf.mxu0
          %v1032 = vadd.f32 %v891, %v1031
          %1033 = vmatmul.bf16.gmra.mxu0 %v856
          %v1034 = vpop.f32.mrf.mxu0
          %v1035 = vadd.f32 %v891, %v1034
          %v1036 = vpop.f32.mrf.mxu0
          %v1037 = vadd.f32 %v891, %v1036
          %1038 = vmatmul.bf16.gmra.mxu0 %v857
          %v1039 = vpop.f32.mrf.mxu0
          %v1040 = vadd.f32 %v891, %v1039
          %v1041 = vpop.f32.mrf.mxu0
          %v1042 = vadd.f32 %v891, %v1041
          %1043 = vmatmul.bf16.gmra.mxu0 %v858
          %v1044 = vpop.f32.mrf.mxu0
          %v1045 = vadd.f32 %v891, %v1044
          %v1046 = vpop.f32.mrf.mxu0
          %v1047 = vadd.f32 %v891, %v1046
          %1048 = vmatmul.bf16.gmra.mxu0 %v859
          %v1049 = vpop.f32.mrf.mxu0
          %v1050 = vadd.f32 %v891, %v1049
          %v1051 = vpop.f32.mrf.mxu0
          %v1052 = vadd.f32 %v891, %v1051
          %1053 = vmatmul.bf16.gmra.mxu0 %v860
          %v1054 = vpop.f32.mrf.mxu0
          %v1055 = vadd.f32 %v891, %v1054
          %v1056 = vpop.f32.mrf.mxu0
          %v1057 = vadd.f32 %v891, %v1056
          %1058 = vmatmul.bf16.gmra.mxu0 %v861
          %v1059 = vpop.f32.mrf.mxu0
          %v1060 = vadd.f32 %v891, %v1059
          %v1061 = vpop.f32.mrf.mxu0
          %v1062 = vadd.f32 %v891, %v1061
          %1063 = vmatmul.bf16.gmra.mxu0 %v862
          %v1064 = vpop.f32.mrf.mxu0
          %v1065 = vadd.f32 %v891, %v1064
          %v1066 = vpop.f32.mrf.mxu0
          %v1067 = vadd.f32 %v891, %v1066
          %1068 = vmatmul.bf16.gmra.mxu0 %v863
          %v1069 = vpop.f32.mrf.mxu0
          %v1070 = vadd.f32 %v891, %v1069
          %v1071 = vpop.f32.mrf.mxu0
          %v1072 = vadd.f32 %v891, %v1071
          %1073 = vmatmul.bf16.gmra.mxu0 %v864
          %v1074 = vpop.f32.mrf.mxu0
          %v1075 = vadd.f32 %v891, %v1074
          %v1076 = vpop.f32.mrf.mxu0
          %v1077 = vadd.f32 %v891, %v1076
          %1078 = vmatmul.bf16.gmra.mxu0 %v865
          %v1079 = vpop.f32.mrf.mxu0
          %v1080 = vadd.f32 %v891, %v1079
          %v1081 = vpop.f32.mrf.mxu0
          %v1082 = vadd.f32 %v891, %v1081
          %1083 = vmatmul.bf16.gmra.mxu0 %v866
          %v1084 = vpop.f32.mrf.mxu0
          %v1085 = vadd.f32 %v891, %v1084
          %v1086 = vpop.f32.mrf.mxu0
          %v1087 = vadd.f32 %v891, %v1086
          %1088 = vmatmul.bf16.gmra.mxu0 %v867
          %v1089 = vpop.f32.mrf.mxu0
          %v1090 = vadd.f32 %v891, %v1089
          %v1091 = vpop.f32.mrf.mxu0
          %v1092 = vadd.f32 %v891, %v1091
          %1093 = vmatmul.bf16.gmra.mxu0 %v868
          %v1094 = vpop.f32.mrf.mxu0
          %v1095 = vadd.f32 %v891, %v1094
          %v1096 = vpop.f32.mrf.mxu0
          %v1097 = vadd.f32 %v891, %v1096
          %1098 = vmatmul.bf16.gmra.mxu0 %v869
          %v1099 = vpop.f32.mrf.mxu0
          %v1100 = vadd.f32 %v891, %v1099
          %v1101 = vpop.f32.mrf.mxu0
          %v1102 = vadd.f32 %v891, %v1101
          %1103 = vmatmul.bf16.gmra.mxu0 %v870
          %v1104 = vpop.f32.mrf.mxu0
          %v1105 = vadd.f32 %v891, %v1104
          %v1106 = vpop.f32.mrf.mxu0
          %v1107 = vadd.f32 %v891, %v1106
          %1108 = vdwg.mxu0
          %p1109 = scmp.lt.s32.totalorder %s25, 5
          // Predicated region
          $region61: #{tpu_custom_call.1} parent=59 // pred_check
            %p1110 = pneg %p1109
          $region62: #{tpu_custom_call.1} parent=59 // pred_check_branch
            %1112 = sbr.rel (%p1110) target = $region64
          $region63: #{tpu_custom_call.1} parent=59 // pred_region
            %vm1113 = vcmp.ge.f32.partialorder %v950, 0.0
            %vm1114 = vcmp.ge.f32.partialorder %v952, 0.0
            %vm1115 = vcmp.ge.f32.partialorder %v955, 0.0
            %vm1116 = vcmp.ge.f32.partialorder %v957, 0.0
            %vm1117 = vcmp.ge.f32.partialorder %v960, 0.0
            %vm1118 = vcmp.ge.f32.partialorder %v962, 0.0
            %vm1119 = vcmp.ge.f32.partialorder %v965, 0.0
            %vm1120 = vcmp.ge.f32.partialorder %v967, 0.0
            %vm1121 = vcmp.ge.f32.partialorder %v970, 0.0
            %vm1122 = vcmp.ge.f32.partialorder %v972, 0.0
            %vm1123 = vcmp.ge.f32.partialorder %v975, 0.0
            %vm1124 = vcmp.ge.f32.partialorder %v977, 0.0
            %vm1125 = vcmp.ge.f32.partialorder %v980, 0.0
            %vm1126 = vcmp.ge.f32.partialorder %v982, 0.0
            %vm1127 = vcmp.ge.f32.partialorder %v985, 0.0
            %vm1128 = vcmp.ge.f32.partialorder %v987, 0.0
            %vm1129 = vcmp.ge.f32.partialorder %v990, 0.0
            %vm1130 = vcmp.ge.f32.partialorder %v992, 0.0
            %vm1131 = vcmp.ge.f32.partialorder %v995, 0.0
            %vm1132 = vcmp.ge.f32.partialorder %v997, 0.0
            %vm1133 = vcmp.ge.f32.partialorder %v1000, 0.0
            %vm1134 = vcmp.ge.f32.partialorder %v1002, 0.0
            %vm1135 = vcmp.ge.f32.partialorder %v1005, 0.0
            %vm1136 = vcmp.ge.f32.partialorder %v1007, 0.0
            %vm1137 = vcmp.ge.f32.partialorder %v1010, 0.0
            %vm1138 = vcmp.ge.f32.partialorder %v1012, 0.0
            %vm1139 = vcmp.ge.f32.partialorder %v1015, 0.0
            %vm1140 = vcmp.ge.f32.partialorder %v1017, 0.0
            %vm1141 = vcmp.ge.f32.partialorder %v1020, 0.0
            %vm1142 = vcmp.ge.f32.partialorder %v1022, 0.0
            %vm1143 = vcmp.ge.f32.partialorder %v1025, 0.0
            %vm1144 = vcmp.ge.f32.partialorder %v1027, 0.0
            %vm1145 = vcmp.ge.f32.partialorder %v1030, 0.0
            %vm1146 = vcmp.ge.f32.partialorder %v1032, 0.0
            %vm1147 = vcmp.ge.f32.partialorder %v1035, 0.0
            %vm1148 = vcmp.ge.f32.partialorder %v1037, 0.0
            %vm1149 = vcmp.ge.f32.partialorder %v1040, 0.0
            %vm1150 = vcmp.ge.f32.partialorder %v1042, 0.0
            %vm1151 = vcmp.ge.f32.partialorder %v1045, 0.0
            %vm1152 = vcmp.ge.f32.partialorder %v1047, 0.0
            %vm1153 = vcmp.ge.f32.partialorder %v1050, 0.0
            %vm1154 = vcmp.ge.f32.partialorder %v1052, 0.0
            %vm1155 = vcmp.ge.f32.partialorder %v1055, 0.0
            %vm1156 = vcmp.ge.f32.partialorder %v1057, 0.0
            %vm1157 = vcmp.ge.f32.partialorder %v1060, 0.0
            %vm1158 = vcmp.ge.f32.partialorder %v1062, 0.0
            %vm1159 = vcmp.ge.f32.partialorder %v1065, 0.0
            %vm1160 = vcmp.ge.f32.partialorder %v1067, 0.0
            %vm1161 = vcmp.ge.f32.partialorder %v1070, 0.0
            %vm1162 = vcmp.ge.f32.partialorder %v1072, 0.0
            %vm1163 = vcmp.ge.f32.partialorder %v1075, 0.0
            %vm1164 = vcmp.ge.f32.partialorder %v1077, 0.0
            %vm1165 = vcmp.ge.f32.partialorder %v1080, 0.0
            %vm1166 = vcmp.ge.f32.partialorder %v1082, 0.0
            %vm1167 = vcmp.ge.f32.partialorder %v1085, 0.0
            %vm1168 = vcmp.ge.f32.partialorder %v1087, 0.0
            %vm1169 = vcmp.ge.f32.partialorder %v1090, 0.0
            %vm1170 = vcmp.ge.f32.partialorder %v1092, 0.0
            %vm1171 = vcmp.ge.f32.partialorder %v1095, 0.0
            %vm1172 = vcmp.ge.f32.partialorder %v1097, 0.0
            %vm1173 = vcmp.ge.f32.partialorder %v1100, 0.0
            %vm1174 = vcmp.ge.f32.partialorder %v1102, 0.0
            %vm1175 = vcmp.ge.f32.partialorder %v1105, 0.0
            %vm1176 = vcmp.ge.f32.partialorder %v1107, 0.0
            %v1177 = vmul.f32 %v950, 0.15
            %v1178 = vmul.f32 %v952, 0.15
            %v1179 = vmul.f32 %v955, 0.15
            %v1180 = vmul.f32 %v957, 0.15
            %v1181 = vmul.f32 %v960, 0.15
            %v1182 = vmul.f32 %v962, 0.15
            %v1183 = vmul.f32 %v965, 0.15
            %v1184 = vmul.f32 %v967, 0.15
            %v1185 = vmul.f32 %v970, 0.15
            %v1186 = vmul.f32 %v972, 0.15
            %v1187 = vmul.f32 %v975, 0.15
            %v1188 = vmul.f32 %v977, 0.15
            %v1189 = vmul.f32 %v980, 0.15
            %v1190 = vmul.f32 %v982, 0.15
            %v1191 = vmul.f32 %v985, 0.15
            %v1192 = vmul.f32 %v987, 0.15
            %v1193 = vmul.f32 %v990, 0.15
            %v1194 = vmul.f32 %v992, 0.15
            %v1195 = vmul.f32 %v995, 0.15
            %v1196 = vmul.f32 %v997, 0.15
            %v1197 = vmul.f32 %v1000, 0.15
            %v1198 = vmul.f32 %v1002, 0.15
            %v1199 = vmul.f32 %v1005, 0.15
            %v1200 = vmul.f32 %v1007, 0.15
            %v1201 = vmul.f32 %v1010, 0.15
            %v1202 = vmul.f32 %v1012, 0.15
            %v1203 = vmul.f32 %v1015, 0.15
            %v1204 = vmul.f32 %v1017, 0.15
            %v1205 = vmul.f32 %v1020, 0.15
            %v1206 = vmul.f32 %v1022, 0.15
            %v1207 = vmul.f32 %v1025, 0.15
            %v1208 = vmul.f32 %v1027, 0.15
            %v1209 = vmul.f32 %v1030, 0.15
            %v1210 = vmul.f32 %v1032, 0.15
            %v1211 = vmul.f32 %v1035, 0.15
            %v1212 = vmul.f32 %v1037, 0.15
            %v1213 = vmul.f32 %v1040, 0.15
            %v1214 = vmul.f32 %v1042, 0.15
            %v1215 = vmul.f32 %v1045, 0.15
            %v1216 = vmul.f32 %v1047, 0.15
            %v1217 = vmul.f32 %v1050, 0.15
            %v1218 = vmul.f32 %v1052, 0.15
            %v1219 = vmul.f32 %v1055, 0.15
            %v1220 = vmul.f32 %v1057, 0.15
            %v1221 = vmul.f32 %v1060, 0.15
            %v1222 = vmul.f32 %v1062, 0.15
            %v1223 = vmul.f32 %v1065, 0.15
            %v1224 = vmul.f32 %v1067, 0.15
            %v1225 = vmul.f32 %v1070, 0.15
            %v1226 = vmul.f32 %v1072, 0.15
            %v1227 = vmul.f32 %v1075, 0.15
            %v1228 = vmul.f32 %v1077, 0.15
            %v1229 = vmul.f32 %v1080, 0.15
            %v1230 = vmul.f32 %v1082, 0.15
            %v1231 = vmul.f32 %v1085, 0.15
            %v1232 = vmul.f32 %v1087, 0.15
            %v1233 = vmul.f32 %v1090, 0.15
            %v1234 = vmul.f32 %v1092, 0.15
            %v1235 = vmul.f32 %v1095, 0.15
            %v1236 = vmul.f32 %v1097, 0.15
            %v1237 = vmul.f32 %v1100, 0.15
            %v1238 = vmul.f32 %v1102, 0.15
            %v1239 = vmul.f32 %v1105, 0.15
            %v1240 = vmul.f32 %v1107, 0.15
            %v1241 = vsel %vm1113, %v950, %v1177
            %v1242 = vsel %vm1114, %v952, %v1178
            %v1243 = vsel %vm1115, %v955, %v1179
            %v1244 = vsel %vm1116, %v957, %v1180
            %v1245 = vsel %vm1117, %v960, %v1181
            %v1246 = vsel %vm1118, %v962, %v1182
            %v1247 = vsel %vm1119, %v965, %v1183
            %v1248 = vsel %vm1120, %v967, %v1184
            %v1249 = vsel %vm1121, %v970, %v1185
            %v1250 = vsel %vm1122, %v972, %v1186
            %v1251 = vsel %vm1123, %v975, %v1187
            %v1252 = vsel %vm1124, %v977, %v1188
            %v1253 = vsel %vm1125, %v980, %v1189
            %v1254 = vsel %vm1126, %v982, %v1190
            %v1255 = vsel %vm1127, %v985, %v1191
            %v1256 = vsel %vm1128, %v987, %v1192
            %v1257 = vsel %vm1129, %v990, %v1193
            %v1258 = vsel %vm1130, %v992, %v1194
            %v1259 = vsel %vm1131, %v995, %v1195
            %v1260 = vsel %vm1132, %v997, %v1196
            %v1261 = vsel %vm1133, %v1000, %v1197
            %v1262 = vsel %vm1134, %v1002, %v1198
            %v1263 = vsel %vm1135, %v1005, %v1199
            %v1264 = vsel %vm1136, %v1007, %v1200
            %v1265 = vsel %vm1137, %v1010, %v1201
            %v1266 = vsel %vm1138, %v1012, %v1202
            %v1267 = vsel %vm1139, %v1015, %v1203
            %v1268 = vsel %vm1140, %v1017, %v1204
            %v1269 = vsel %vm1141, %v1020, %v1205
            %v1270 = vsel %vm1142, %v1022, %v1206
            %v1271 = vsel %vm1143, %v1025, %v1207
            %v1272 = vsel %vm1144, %v1027, %v1208
            %v1273 = vsel %vm1145, %v1030, %v1209
            %v1274 = vsel %vm1146, %v1032, %v1210
            %v1275 = vsel %vm1147, %v1035, %v1211
            %v1276 = vsel %vm1148, %v1037, %v1212
            %v1277 = vsel %vm1149, %v1040, %v1213
            %v1278 = vsel %vm1150, %v1042, %v1214
            %v1279 = vsel %vm1151, %v1045, %v1215
            %v1280 = vsel %vm1152, %v1047, %v1216
            %v1281 = vsel %vm1153, %v1050, %v1217
            %v1282 = vsel %vm1154, %v1052, %v1218
            %v1283 = vsel %vm1155, %v1055, %v1219
            %v1284 = vsel %vm1156, %v1057, %v1220
            %v1285 = vsel %vm1157, %v1060, %v1221
            %v1286 = vsel %vm1158, %v1062, %v1222
            %v1287 = vsel %vm1159, %v1065, %v1223
            %v1288 = vsel %vm1160, %v1067, %v1224
            %v1289 = vsel %vm1161, %v1070, %v1225
            %v1290 = vsel %vm1162, %v1072, %v1226
            %v1291 = vsel %vm1163, %v1075, %v1227
            %v1292 = vsel %vm1164, %v1077, %v1228
            %v1293 = vsel %vm1165, %v1080, %v1229
            %v1294 = vsel %vm1166, %v1082, %v1230
            %v1295 = vsel %vm1167, %v1085, %v1231
            %v1296 = vsel %vm1168, %v1087, %v1232
            %v1297 = vsel %vm1169, %v1090, %v1233
            %v1298 = vsel %vm1170, %v1092, %v1234
            %v1299 = vsel %vm1171, %v1095, %v1235
            %v1300 = vsel %vm1172, %v1097, %v1236
            %v1301 = vsel %vm1173, %v1100, %v1237
            %v1302 = vsel %vm1174, %v1102, %v1238
            %v1303 = vsel %vm1175, %v1105, %v1239
            %v1304 = vsel %vm1176, %v1107, %v1240
            %1305 = vst [vmem:[%s635] sm:$0xff] %v1241
            %1306 = vst [vmem:[%s635 + $0x8] sm:$0xff] %v1242
            %1307 = vst [vmem:[%s635 + $0x10] sm:$0xff] %v1243
            %1308 = vst [vmem:[%s635 + $0x18] sm:$0xff] %v1244
            %1309 = vst [vmem:[%s635 + $0x20] sm:$0xff] %v1245
            %1310 = vst [vmem:[%s635 + $0x28] sm:$0xff] %v1246
            %1311 = vst [vmem:[%s635 + $0x30] sm:$0xff] %v1247
            %1312 = vst [vmem:[%s635 + $0x38] sm:$0xff] %v1248
            %1313 = vst [vmem:[%s635 + $0x40] sm:$0xff] %v1249
            %1314 = vst [vmem:[%s635 + $0x48] sm:$0xff] %v1250
            %1315 = vst [vmem:[%s635 + $0x50] sm:$0xff] %v1251
            %1316 = vst [vmem:[%s635 + $0x58] sm:$0xff] %v1252
            %1317 = vst [vmem:[%s635 + $0x60] sm:$0xff] %v1253
            %1318 = vst [vmem:[%s635 + $0x68] sm:$0xff] %v1254
            %1319 = vst [vmem:[%s635 + $0x70] sm:$0xff] %v1255
            %1320 = vst [vmem:[%s635 + $0x78] sm:$0xff] %v1256
            %1321 = vst [vmem:[%s635 + $0x80] sm:$0xff] %v1257
            %1322 = vst [vmem:[%s635 + $0x88] sm:$0xff] %v1258
            %1323 = vst [vmem:[%s635 + $0x90] sm:$0xff] %v1259
            %1324 = vst [vmem:[%s635 + $0x98] sm:$0xff] %v1260
            %1325 = vst [vmem:[%s635 + $0xa0] sm:$0xff] %v1261
            %1326 = vst [vmem:[%s635 + $0xa8] sm:$0xff] %v1262
            %1327 = vst [vmem:[%s635 + $0xb0] sm:$0xff] %v1263
            %1328 = vst [vmem:[%s635 + $0xb8] sm:$0xff] %v1264
            %1329 = vst [vmem:[%s635 + $0xc0] sm:$0xff] %v1265
            %1330 = vst [vmem:[%s635 + $0xc8] sm:$0xff] %v1266
            %1331 = vst [vmem:[%s635 + $0xd0] sm:$0xff] %v1267
            %1332 = vst [vmem:[%s635 + $0xd8] sm:$0xff] %v1268
            %1333 = vst [vmem:[%s635 + $0xe0] sm:$0xff] %v1269
            %1334 = vst [vmem:[%s635 + $0xe8] sm:$0xff] %v1270
            %1335 = vst [vmem:[%s635 + $0xf0] sm:$0xff] %v1271
            %1336 = vst [vmem:[%s635 + $0xf8] sm:$0xff] %v1272
            %1337 = vst [vmem:[%s635 + $0x100] sm:$0xff] %v1273
            %1338 = vst [vmem:[%s635 + $0x108] sm:$0xff] %v1274
            %1339 = vst [vmem:[%s635 + $0x110] sm:$0xff] %v1275
            %1340 = vst [vmem:[%s635 + $0x118] sm:$0xff] %v1276
            %1341 = vst [vmem:[%s635 + $0x120] sm:$0xff] %v1277
            %1342 = vst [vmem:[%s635 + $0x128] sm:$0xff] %v1278
            %1343 = vst [vmem:[%s635 + $0x130] sm:$0xff] %v1279
            %1344 = vst [vmem:[%s635 + $0x138] sm:$0xff] %v1280
            %1345 = vst [vmem:[%s635 + $0x140] sm:$0xff] %v1281
            %1346 = vst [vmem:[%s635 + $0x148] sm:$0xff] %v1282
            %1347 = vst [vmem:[%s635 + $0x150] sm:$0xff] %v1283
            %1348 = vst [vmem:[%s635 + $0x158] sm:$0xff] %v1284
            %1349 = vst [vmem:[%s635 + $0x160] sm:$0xff] %v1285
            %1350 = vst [vmem:[%s635 + $0x168] sm:$0xff] %v1286
            %1351 = vst [vmem:[%s635 + $0x170] sm:$0xff] %v1287
            %1352 = vst [vmem:[%s635 + $0x178] sm:$0xff] %v1288
            %1353 = vst [vmem:[%s635 + $0x180] sm:$0xff] %v1289
            %1354 = vst [vmem:[%s635 + $0x188] sm:$0xff] %v1290
            %1355 = vst [vmem:[%s635 + $0x190] sm:$0xff] %v1291
            %1356 = vst [vmem:[%s635 + $0x198] sm:$0xff] %v1292
            %1357 = vst [vmem:[%s635 + $0x1a0] sm:$0xff] %v1293
            %1358 = vst [vmem:[%s635 + $0x1a8] sm:$0xff] %v1294
            %1359 = vst [vmem:[%s635 + $0x1b0] sm:$0xff] %v1295
            %1360 = vst [vmem:[%s635 + $0x1b8] sm:$0xff] %v1296
            %1361 = vst [vmem:[%s635 + $0x1c0] sm:$0xff] %v1297
            %1362 = vst [vmem:[%s635 + $0x1c8] sm:$0xff] %v1298
            %1363 = vst [vmem:[%s635 + $0x1d0] sm:$0xff] %v1299
            %1364 = vst [vmem:[%s635 + $0x1d8] sm:$0xff] %v1300
            %1365 = vst [vmem:[%s635 + $0x1e0] sm:$0xff] %v1301
            %1366 = vst [vmem:[%s635 + $0x1e8] sm:$0xff] %v1302
            %1367 = vst [vmem:[%s635 + $0x1f0] sm:$0xff] %v1303
            %1368 = vst [vmem:[%s635 + $0x1f8] sm:$0xff] %v1304
            %v1369 = vld [vmem:[#allocation3] sm:$0x1]
            %v1370 = vadd.f32 %v1241, %v1242
            %v1371 = vadd.f32 %v1370, %v1243
            %v1372 = vadd.f32 %v1371, %v1244
            %v1373 = vadd.f32 %v1372, %v1245
            %v1374 = vadd.f32 %v1373, %v1246
            %v1375 = vadd.f32 %v1374, %v1247
            %v1376 = vadd.f32 %v1375, %v1248
            %v1377 = vadd.f32 %v1376, %v1249
            %v1378 = vadd.f32 %v1377, %v1250
            %v1379 = vadd.f32 %v1378, %v1251
            %v1380 = vadd.f32 %v1379, %v1252
            %v1381 = vadd.f32 %v1380, %v1253
            %v1382 = vadd.f32 %v1381, %v1254
            %v1383 = vadd.f32 %v1382, %v1255
            %v1384 = vadd.f32 %v1383, %v1256
            %v1385 = vadd.f32 %v1384, %v1257
            %v1386 = vadd.f32 %v1385, %v1258
            %v1387 = vadd.f32 %v1386, %v1259
            %v1388 = vadd.f32 %v1387, %v1260
            %v1389 = vadd.f32 %v1388, %v1261
            %v1390 = vadd.f32 %v1389, %v1262
            %v1391 = vadd.f32 %v1390, %v1263
            %v1392 = vadd.f32 %v1391, %v1264
            %v1393 = vadd.f32 %v1392, %v1265
            %v1394 = vadd.f32 %v1393, %v1266
            %v1395 = vadd.f32 %v1394, %v1267
            %v1396 = vadd.f32 %v1395, %v1268
            %v1397 = vadd.f32 %v1396, %v1269
            %v1398 = vadd.f32 %v1397, %v1270
            %v1399 = vadd.f32 %v1398, %v1271
            %v1400 = vadd.f32 %v1399, %v1272
            %v1401 = vadd.f32 %v1400, %v1273
            %v1402 = vadd.f32 %v1401, %v1274
            %v1403 = vadd.f32 %v1402, %v1275
            %v1404 = vadd.f32 %v1403, %v1276
            %v1405 = vadd.f32 %v1404, %v1277
            %v1406 = vadd.f32 %v1405, %v1278
            %v1407 = vadd.f32 %v1406, %v1279
            %v1408 = vadd.f32 %v1407, %v1280
            %v1409 = vadd.f32 %v1408, %v1281
            %v1410 = vadd.f32 %v1409, %v1282
            %v1411 = vadd.f32 %v1410, %v1283
            %v1412 = vadd.f32 %v1411, %v1284
            %v1413 = vadd.f32 %v1412, %v1285
            %v1414 = vadd.f32 %v1413, %v1286
            %v1415 = vadd.f32 %v1414, %v1287
            %v1416 = vadd.f32 %v1415, %v1288
            %v1417 = vadd.f32 %v1416, %v1289
            %v1418 = vadd.f32 %v1417, %v1290
            %v1419 = vadd.f32 %v1418, %v1291
            %v1420 = vadd.f32 %v1419, %v1292
            %v1421 = vadd.f32 %v1420, %v1293
            %v1422 = vadd.f32 %v1421, %v1294
            %v1423 = vadd.f32 %v1422, %v1295
            %v1424 = vadd.f32 %v1423, %v1296
            %v1425 = vadd.f32 %v1424, %v1297
            %v1426 = vadd.f32 %v1425, %v1298
            %v1427 = vadd.f32 %v1426, %v1299
            %v1428 = vadd.f32 %v1427, %v1300
            %v1429 = vadd.f32 %v1428, %v1301
            %v1430 = vadd.f32 %v1429, %v1302
            %v1431 = vadd.f32 %v1430, %v1303
            %v1432 = vadd.f32 %v1431, %v1304
            %v1433 = vrot.slane %v1432, 4
            %v1434 = vadd.f32 %v1432, %v1433
            %v1435 = vrot.slane %v1434, 2
            %v1436 = vadd.f32 %v1434, %v1435
            %v1437 = vrot.slane %v1436, 1
            %v1438 = vadd.f32 %v1436, %v1437
            %v1439 = vadd.f32 %v1369, %v1438
            %1440 = vst [vmem:[#allocation3] sm:$0x1] %v1439
            %v1441 = vld [vmem:[#allocation4] sm:$0x1]
            %v1442 = vmul.f32 %v1241, %v1241
            %v1443 = vmul.f32 %v1242, %v1242
            %v1444 = vmul.f32 %v1243, %v1243
            %v1445 = vmul.f32 %v1244, %v1244
            %v1446 = vmul.f32 %v1245, %v1245
            %v1447 = vmul.f32 %v1246, %v1246
            %v1448 = vmul.f32 %v1247, %v1247
            %v1449 = vmul.f32 %v1248, %v1248
            %v1450 = vmul.f32 %v1249, %v1249
            %v1451 = vmul.f32 %v1250, %v1250
            %v1452 = vmul.f32 %v1251, %v1251
            %v1453 = vmul.f32 %v1252, %v1252
            %v1454 = vmul.f32 %v1253, %v1253
            %v1455 = vmul.f32 %v1254, %v1254
            %v1456 = vmul.f32 %v1255, %v1255
            %v1457 = vmul.f32 %v1256, %v1256
            %v1458 = vmul.f32 %v1257, %v1257
            %v1459 = vmul.f32 %v1258, %v1258
            %v1460 = vmul.f32 %v1259, %v1259
            %v1461 = vmul.f32 %v1260, %v1260
            %v1462 = vmul.f32 %v1261, %v1261
            %v1463 = vmul.f32 %v1262, %v1262
            %v1464 = vmul.f32 %v1263, %v1263
            %v1465 = vmul.f32 %v1264, %v1264
            %v1466 = vmul.f32 %v1265, %v1265
            %v1467 = vmul.f32 %v1266, %v1266
            %v1468 = vmul.f32 %v1267, %v1267
            %v1469 = vmul.f32 %v1268, %v1268
            %v1470 = vmul.f32 %v1269, %v1269
            %v1471 = vmul.f32 %v1270, %v1270
            %v1472 = vmul.f32 %v1271, %v1271
            %v1473 = vmul.f32 %v1272, %v1272
            %v1474 = vmul.f32 %v1273, %v1273
            %v1475 = vmul.f32 %v1274, %v1274
            %v1476 = vmul.f32 %v1275, %v1275
            %v1477 = vmul.f32 %v1276, %v1276
            %v1478 = vmul.f32 %v1277, %v1277
            %v1479 = vmul.f32 %v1278, %v1278
            %v1480 = vmul.f32 %v1279, %v1279
            %v1481 = vmul.f32 %v1280, %v1280
            %v1482 = vmul.f32 %v1281, %v1281
            %v1483 = vmul.f32 %v1282, %v1282
            %v1484 = vmul.f32 %v1283, %v1283
            %v1485 = vmul.f32 %v1284, %v1284
            %v1486 = vmul.f32 %v1285, %v1285
            %v1487 = vmul.f32 %v1286, %v1286
            %v1488 = vmul.f32 %v1287, %v1287
            %v1489 = vmul.f32 %v1288, %v1288
            %v1490 = vmul.f32 %v1289, %v1289
            %v1491 = vmul.f32 %v1290, %v1290
            %v1492 = vmul.f32 %v1291, %v1291
            %v1493 = vmul.f32 %v1292, %v1292
            %v1494 = vmul.f32 %v1293, %v1293
            %v1495 = vmul.f32 %v1294, %v1294
            %v1496 = vmul.f32 %v1295, %v1295
            %v1497 = vmul.f32 %v1296, %v1296
            %v1498 = vmul.f32 %v1297, %v1297
            %v1499 = vmul.f32 %v1298, %v1298
            %v1500 = vmul.f32 %v1299, %v1299
            %v1501 = vmul.f32 %v1300, %v1300
            %v1502 = vmul.f32 %v1301, %v1301
            %v1503 = vmul.f32 %v1302, %v1302
            %v1504 = vmul.f32 %v1303, %v1303
            %v1505 = vmul.f32 %v1304, %v1304
            %v1506 = vadd.f32 %v1442, %v1443
            %v1507 = vadd.f32 %v1506, %v1444
            %v1508 = vadd.f32 %v1507, %v1445
            %v1509 = vadd.f32 %v1508, %v1446
            %v1510 = vadd.f32 %v1509, %v1447
            %v1511 = vadd.f32 %v1510, %v1448
            %v1512 = vadd.f32 %v1511, %v1449
            %v1513 = vadd.f32 %v1512, %v1450
            %v1514 = vadd.f32 %v1513, %v1451
            %v1515 = vadd.f32 %v1514, %v1452
            %v1516 = vadd.f32 %v1515, %v1453
            %v1517 = vadd.f32 %v1516, %v1454
            %v1518 = vadd.f32 %v1517, %v1455
            %v1519 = vadd.f32 %v1518, %v1456
            %v1520 = vadd.f32 %v1519, %v1457
            %v1521 = vadd.f32 %v1520, %v1458
            %v1522 = vadd.f32 %v1521, %v1459
            %v1523 = vadd.f32 %v1522, %v1460
            %v1524 = vadd.f32 %v1523, %v1461
            %v1525 = vadd.f32 %v1524, %v1462
            %v1526 = vadd.f32 %v1525, %v1463
            %v1527 = vadd.f32 %v1526, %v1464
            %v1528 = vadd.f32 %v1527, %v1465
            %v1529 = vadd.f32 %v1528, %v1466
            %v1530 = vadd.f32 %v1529, %v1467
            %v1531 = vadd.f32 %v1530, %v1468
            %v1532 = vadd.f32 %v1531, %v1469
            %v1533 = vadd.f32 %v1532, %v1470
            %v1534 = vadd.f32 %v1533, %v1471
            %v1535 = vadd.f32 %v1534, %v1472
            %v1536 = vadd.f32 %v1535, %v1473
            %v1537 = vadd.f32 %v1536, %v1474
            %v1538 = vadd.f32 %v1537, %v1475
            %v1539 = vadd.f32 %v1538, %v1476
            %v1540 = vadd.f32 %v1539, %v1477
            %v1541 = vadd.f32 %v1540, %v1478
            %v1542 = vadd.f32 %v1541, %v1479
            %v1543 = vadd.f32 %v1542, %v1480
            %v1544 = vadd.f32 %v1543, %v1481
            %v1545 = vadd.f32 %v1544, %v1482
            %v1546 = vadd.f32 %v1545, %v1483
            %v1547 = vadd.f32 %v1546, %v1484
            %v1548 = vadd.f32 %v1547, %v1485
            %v1549 = vadd.f32 %v1548, %v1486
            %v1550 = vadd.f32 %v1549, %v1487
            %v1551 = vadd.f32 %v1550, %v1488
            %v1552 = vadd.f32 %v1551, %v1489
            %v1553 = vadd.f32 %v1552, %v1490
            %v1554 = vadd.f32 %v1553, %v1491
            %v1555 = vadd.f32 %v1554, %v1492
            %v1556 = vadd.f32 %v1555, %v1493
            %v1557 = vadd.f32 %v1556, %v1494
            %v1558 = vadd.f32 %v1557, %v1495
            %v1559 = vadd.f32 %v1558, %v1496
            %v1560 = vadd.f32 %v1559, %v1497
            %v1561 = vadd.f32 %v1560, %v1498
            %v1562 = vadd.f32 %v1561, %v1499
            %v1563 = vadd.f32 %v1562, %v1500
            %v1564 = vadd.f32 %v1563, %v1501
            %v1565 = vadd.f32 %v1564, %v1502
            %v1566 = vadd.f32 %v1565, %v1503
            %v1567 = vadd.f32 %v1566, %v1504
            %v1568 = vadd.f32 %v1567, %v1505
            %v1569 = vrot.slane %v1568, 4
            %v1570 = vadd.f32 %v1568, %v1569
            %v1571 = vrot.slane %v1570, 2
            %v1572 = vadd.f32 %v1570, %v1571
            %v1573 = vrot.slane %v1572, 1
            %v1574 = vadd.f32 %v1572, %v1573
            %v1575 = vadd.f32 %v1441, %v1574
            %1576 = vst [vmem:[#allocation4] sm:$0x1] %v1575
          $region64: #{tpu_custom_call.1} parent=59 // pred_fallthru
            _
          %p1577 = scmp.eq.s32.totalorder %s25, 5
          // Predicated region
          $region65: #{tpu_custom_call.1} parent=59 // pred_check
            %p1578 = pneg %p1577
          $region66: #{tpu_custom_call.1} parent=59 // pred_check_branch
            %1580 = sbr.rel (%p1578) target = $region68
          $region67: #{tpu_custom_call.1} parent=59 // pred_region
            %1581 = vxpose.xlu0.b32.start [1/16] %v950, 128
            %1582 = vxpose.xlu0.b32.cont [2/16] %v952, 128
            %1583 = vxpose.xlu0.b32.cont [3/16] %v955, 128
            %1584 = vxpose.xlu0.b32.cont [4/16] %v957, 128
            %1585 = vxpose.xlu0.b32.cont [5/16] %v960, 128
            %1586 = vxpose.xlu0.b32.cont [6/16] %v962, 128
            %1587 = vxpose.xlu0.b32.cont [7/16] %v965, 128
            %1588 = vxpose.xlu0.b32.cont [8/16] %v967, 128
            %1589 = vxpose.xlu0.b32.cont [9/16] %v970, 128
            %1590 = vxpose.xlu0.b32.cont [10/16] %v972, 128
            %1591 = vxpose.xlu0.b32.cont [11/16] %v975, 128
            %1592 = vxpose.xlu0.b32.cont [12/16] %v977, 128
            %1593 = vxpose.xlu0.b32.cont [13/16] %v980, 128
            %1594 = vxpose.xlu0.b32.cont [14/16] %v982, 128
            %1595 = vxpose.xlu0.b32.cont [15/16] %v985, 128
            %1596 = vxpose.xlu0.b32.end [16/16] %v987, 128
            %v1597 = vpop.trf.xlu0
            %v1598 = vpop.trf.xlu0
            %v1599 = vpop.trf.xlu0
            %v1600 = vpop.trf.xlu0
            %v1601 = vpop.trf.xlu0
            %v1602 = vpop.trf.xlu0
            %v1603 = vpop.trf.xlu0
            %v1604 = vpop.trf.xlu0
            %v1605 = vpop.trf.xlu0
            %v1606 = vpop.trf.xlu0
            %v1607 = vpop.trf.xlu0
            %v1608 = vpop.trf.xlu0
            %v1609 = vpop.trf.xlu0
            %v1610 = vpop.trf.xlu0
            %v1611 = vpop.trf.xlu0
            %v1612 = vpop.trf.xlu0
            %1613 = vxpose.xlu0.b32.start [1/16] %v990, 128
            %1614 = vxpose.xlu0.b32.cont [2/16] %v992, 128
            %1615 = vxpose.xlu0.b32.cont [3/16] %v995, 128
            %1616 = vxpose.xlu0.b32.cont [4/16] %v997, 128
            %1617 = vxpose.xlu0.b32.cont [5/16] %v1000, 128
            %1618 = vxpose.xlu0.b32.cont [6/16] %v1002, 128
            %1619 = vxpose.xlu0.b32.cont [7/16] %v1005, 128
            %1620 = vxpose.xlu0.b32.cont [8/16] %v1007, 128
            %1621 = vxpose.xlu0.b32.cont [9/16] %v1010, 128
            %1622 = vxpose.xlu0.b32.cont [10/16] %v1012, 128
            %1623 = vxpose.xlu0.b32.cont [11/16] %v1015, 128
            %1624 = vxpose.xlu0.b32.cont [12/16] %v1017, 128
            %1625 = vxpose.xlu0.b32.cont [13/16] %v1020, 128
            %1626 = vxpose.xlu0.b32.cont [14/16] %v1022, 128
            %1627 = vxpose.xlu0.b32.cont [15/16] %v1025, 128
            %1628 = vxpose.xlu0.b32.end [16/16] %v1027, 128
            %v1629 = vpop.trf.xlu0
            %v1630 = vpop.trf.xlu0
            %v1631 = vpop.trf.xlu0
            %v1632 = vpop.trf.xlu0
            %v1633 = vpop.trf.xlu0
            %v1634 = vpop.trf.xlu0
            %v1635 = vpop.trf.xlu0
            %v1636 = vpop.trf.xlu0
            %v1637 = vpop.trf.xlu0
            %v1638 = vpop.trf.xlu0
            %v1639 = vpop.trf.xlu0
            %v1640 = vpop.trf.xlu0
            %v1641 = vpop.trf.xlu0
            %v1642 = vpop.trf.xlu0
            %v1643 = vpop.trf.xlu0
            %v1644 = vpop.trf.xlu0
            %1645 = vxpose.xlu0.b32.start [1/16] %v1030, 128
            %1646 = vxpose.xlu0.b32.cont [2/16] %v1032, 128
            %1647 = vxpose.xlu0.b32.cont [3/16] %v1035, 128
            %1648 = vxpose.xlu0.b32.cont [4/16] %v1037, 128
            %1649 = vxpose.xlu0.b32.cont [5/16] %v1040, 128
            %1650 = vxpose.xlu0.b32.cont [6/16] %v1042, 128
            %1651 = vxpose.xlu0.b32.cont [7/16] %v1045, 128
            %1652 = vxpose.xlu0.b32.cont [8/16] %v1047, 128
            %1653 = vxpose.xlu0.b32.cont [9/16] %v1050, 128
            %1654 = vxpose.xlu0.b32.cont [10/16] %v1052, 128
            %1655 = vxpose.xlu0.b32.cont [11/16] %v1055, 128
            %1656 = vxpose.xlu0.b32.cont [12/16] %v1057, 128
            %1657 = vxpose.xlu0.b32.cont [13/16] %v1060, 128
            %1658 = vxpose.xlu0.b32.cont [14/16] %v1062, 128
            %1659 = vxpose.xlu0.b32.cont [15/16] %v1065, 128
            %1660 = vxpose.xlu0.b32.end [16/16] %v1067, 128
            %v1661 = vpop.trf.xlu0
            %v1662 = vpop.trf.xlu0
            %v1663 = vpop.trf.xlu0
            %v1664 = vpop.trf.xlu0
            %v1665 = vpop.trf.xlu0
            %v1666 = vpop.trf.xlu0
            %v1667 = vpop.trf.xlu0
            %v1668 = vpop.trf.xlu0
            %v1669 = vpop.trf.xlu0
            %v1670 = vpop.trf.xlu0
            %v1671 = vpop.trf.xlu0
            %v1672 = vpop.trf.xlu0
            %v1673 = vpop.trf.xlu0
            %v1674 = vpop.trf.xlu0
            %v1675 = vpop.trf.xlu0
            %v1676 = vpop.trf.xlu0
            %1677 = vxpose.xlu0.b32.start [1/16] %v1070, 128
            %1678 = vxpose.xlu0.b32.cont [2/16] %v1072, 128
            %1679 = vxpose.xlu0.b32.cont [3/16] %v1075, 128
            %1680 = vxpose.xlu0.b32.cont [4/16] %v1077, 128
            %1681 = vxpose.xlu0.b32.cont [5/16] %v1080, 128
            %1682 = vxpose.xlu0.b32.cont [6/16] %v1082, 128
            %1683 = vxpose.xlu0.b32.cont [7/16] %v1085, 128
            %1684 = vxpose.xlu0.b32.cont [8/16] %v1087, 128
            %1685 = vxpose.xlu0.b32.cont [9/16] %v1090, 128
            %1686 = vxpose.xlu0.b32.cont [10/16] %v1092, 128
            %1687 = vxpose.xlu0.b32.cont [11/16] %v1095, 128
            %1688 = vxpose.xlu0.b32.cont [12/16] %v1097, 128
            %1689 = vxpose.xlu0.b32.cont [13/16] %v1100, 128
            %1690 = vxpose.xlu0.b32.cont [14/16] %v1102, 128
            %1691 = vxpose.xlu0.b32.cont [15/16] %v1105, 128
            %1692 = vxpose.xlu0.b32.end [16/16] %v1107, 128
            %v1693 = vpop.trf.xlu0
            %v1694 = vpop.trf.xlu0
            %v1695 = vpop.trf.xlu0
            %v1696 = vpop.trf.xlu0
            %v1697 = vpop.trf.xlu0
            %v1698 = vpop.trf.xlu0
            %v1699 = vpop.trf.xlu0
            %v1700 = vpop.trf.xlu0
            %v1701 = vpop.trf.xlu0
            %v1702 = vpop.trf.xlu0
            %v1703 = vpop.trf.xlu0
            %v1704 = vpop.trf.xlu0
            %v1705 = vpop.trf.xlu0
            %v1706 = vpop.trf.xlu0
            %v1707 = vpop.trf.xlu0
            %v1708 = vpop.trf.xlu0
            %v1713 = vrot.slane %v1629, 7
            %v1714 = vrot.slane %v1661, 6
            %v1715 = vrot.slane %v1693, 5
            %vm1716 = vcmask 1040384
            %v1717 = vsel %vm1716, %v1597, %v1713
            %vm1718 = vcmask 1042434
            %v1719 = vsel %vm1718, %v1714, %v1715
            %vm1720 = vcmask 1041408
            %v1721 = vsel %vm1720, %v1717, %v1719
            %v1723 = vlaneseq
            %vm1724 = vcmp.ge.s32.totalorder %v1723, 0
            %vm1725 = vcmp.lt.s32.totalorder %v1723, 512
            %vm1726 = vmand %vm1724, %vm1725
            %1727 = vst.msk [vmem:[%s245] sm:$0xf] %vm1726, %v1721
          $region68: #{tpu_custom_call.1} parent=59 // pred_fallthru
            _
        $region60: #{tpu_custom_call.1} parent=31 // pred_fallthru
          _
        %s1728 = sand.u32 %s117, 1
        %s1729 = scalar_lea.sflag [#allocation9], %s1728
        %s1730 = sand.u32 %s117, 1
        %s1731 = smul.addr %s1730, 4
        %s1732 = scalar_lea.vmem [#allocation13], %s1731
        // Predicated region
        $region69: #{tpu_custom_call.1} parent=31 // pred_check
          %p1733 = pneg %p127
        $region70: #{tpu_custom_call.1} parent=31 // pred_check_branch
          %1735 = sbr.rel (%p1733) target = $region72
        $region71: #{tpu_custom_call.1} parent=31 // pred_region
          %p1736 = scmp.eq.s32.totalorder %s25, 5
          %s1737 = scalar_select %p1736, %s26, 0
          %1739 = vsyncadd %s1729, 0
          %s1740 = smul.addr %s1737, 4
          %s1741 = scalar_lea.hbm %s3, %s1740
          %s1743 = sshll.u32 %s1732, 4
          %s1744 = int_to_ptr.vmem [resolvable:$true] %s1743
          %s1745 = sshll.u32 %s1741, 4
          %s1746 = int_to_ptr.hbm [resolvable:$true] %s1745
          %1748 = dma.vmem_to_hbm [thread:$0]  %s1744, 64, %s1746, %s1729
        $region72: #{tpu_custom_call.1} parent=31 // pred_fallthru
          _
      $region32: #{tpu_custom_call.1} parent=5 // pred_fallthru
        _
      %p1749 = scmp.le.s32.totalorder 2, %s16
      // Predicated region
      $region73: #{tpu_custom_call.1} parent=5 // pred_check
        %p1750 = pneg %p1749
      $region74: #{tpu_custom_call.1} parent=5 // pred_check_branch
        %1752 = sbr.rel (%p1750) target = $region76
      $region75: #{tpu_custom_call.1} parent=5 // pred_region
        %s1753 = ssub.s32 %s16, 2
        // Predicated region
        $region77: #{tpu_custom_call.1} parent=75 // pred_check
          %p1754 = pneg %p133
        $region78: #{tpu_custom_call.1} parent=75 // pred_check_branch
          %1756 = sbr.rel (%p1754) target = $region80
        $region79: #{tpu_custom_call.1} parent=75 // pred_region
          %s1757 = sand.u32 %s118, 1
          %s1758 = scalar_lea.sflag [#allocation9], %s1757
          %s1759 = sand.u32 %s118, 1
          %s1760 = smul.addr %s1759, 4
          %s1761 = scalar_lea.vmem [#allocation13], %s1760
          %1763 = dma.done %s1758, 64
        $region80: #{tpu_custom_call.1} parent=75 // pred_fallthru
          _
      $region76: #{tpu_custom_call.1} parent=5 // pred_fallthru
        _
    $region6: #{tpu_custom_call.1} parent=1 // loop_footer
      %s20 = sadd.s32 1, %s16
    $region7: #{tpu_custom_call.1} parent=1 // loop_footer_branch
      %15 = sbr.rel target = $region3
    $region8: #{tpu_custom_call.1} parent=1 // loop_exit
      _
    %1764 = vsyncpa [#allocation8], 1
    %s1765 = scalar_lea.sflag [#allocation8], 1
    %1766 = vsyncpa %s1765, 1
    %1767 = vsyncpa [#allocation11], 1
    %1768 = vsyncpa [#allocation9], 1
    %s1769 = scalar_lea.sflag [#allocation9], 1
    %1770 = vsyncpa %s1769, 1

</llo_original>
